<compile_context>
chip_gen: v5e
topology: v5e:2x2
jax: 0.10.0
libtpu: 0.0.40
codegen_flags: <defaults>
</compile_context>

<pallas_src>
import jax
import jax.numpy as jnp
import numpy as np
from jax import lax
from jax.experimental import pallas as pl
from jax.experimental.pallas import tpu as pltpu


def _fold_bn(w, gamma, beta, mean, var, eps=1e-5):
    """Fold eval-mode BatchNorm2d into a bias-free 1x1 conv."""
    scale = gamma / jnp.sqrt(var + eps)
    w_eff = w * scale[:, None]          # (O, C)
    b_eff = beta - mean * scale         # (O,)
    return w_eff.astype(jnp.float32), b_eff.astype(jnp.float32)


def _sigmoid(v):
    return 1.0 / (1.0 + jnp.exp(-v))


# -----------------------------------------------------------------------------
# Kernel: one batch element per grid step, everything lane-packed as (H, C*W).
# -----------------------------------------------------------------------------
def _meum_kernel(x_ref, u_h_ref, u_w_ref, a_h_ref, a_w_ref,
                 w_in_ref, b_in_ref, w_mid_ref, b_mid_ref,
                 w_ee_ref, b_ee_ref, w_out_ref, b_out_ref, o_ref):
    f32 = jnp.float32
    width = w_out_ref.shape[0]

    def mm(a, b):
        return jnp.dot(a, b, preferred_element_type=f32)

    def sigmoid(v):
        # exp on the EUP; approximate reciprocal keeps the divide off the VALU.
        return pl.reciprocal(1.0 + jnp.exp(-v), approx=True)

    a_h = a_h_ref[...]            # (H, H)      banded (row pool)
    a_w = a_w_ref[...]            # (hidW,hidW) block-diag banded (col pool)

    def pool(t):
        # AvgPool2d(3, stride=1, padding=1), count_include_pad=True -> /9 always.
        return mm(mm(a_h, t), a_w) * (1.0 / 9.0)

    # nn.Upsample(scale_factor=2, mode='nearest'):  (H0, Cin*W0) -> (H, Cin*W)
    up = mm(mm(u_h_ref[...], x_ref[...]), u_w_ref[...])

    # MEEM.in_conv : 1x1 conv (BN folded) + sigmoid  ->  mid : (H, hid*W)
    mid = sigmoid(mm(up, w_in_ref[...]) + b_in_ref[...])

    # MEEM.out_conv accumulated incrementally over the concat scales.
    acc = mm(mid, w_out_ref[0])                       # scale 0 contribution

    for i in range(width - 1):
        mid = pool(mid)
        mid = sigmoid(mm(mid, w_mid_ref[i]) + b_mid_ref[pl.ds(i, 1), :])
        # EdgeEnhancer: edge = sigmoid(conv(x - avgpool(x))); result = x + edge
        edge = mid - pool(mid)
        edge = sigmoid(mm(edge, w_ee_ref[i]) + b_ee_ref[pl.ds(i, 1), :])
        acc = acc + mm(mid + edge, w_out_ref[i + 1])  # scale i+1 contribution

    # out_conv bias + ReLU, lane-dense (H, Cout*W) store.
    o_ref[...] = jnp.maximum(acc + b_out_ref[...], 0.0).astype(o_ref.dtype)


# -----------------------------------------------------------------------------
# Wrapper: builds grid-invariant operator / block-weight matrices and packs the
# NCHW tensors into lane-dense slabs.
# -----------------------------------------------------------------------------
def _const_spec(a):
    n = a.ndim

    def idx(b):
        return (0,) * n

    return pl.BlockSpec(a.shape, idx)


def meum_forward(x, params, *, width=4):
    """x: (N, Cin, H0, W0) float32 NCHW. Returns (N, Cout, 2*H0, 2*W0)."""
    n, cin, h0, w0 = x.shape
    hid = cin // 2
    cout = params["w_out"].shape[0]
    H, W = 2 * h0, 2 * w0
    f32 = jnp.float32

    # --- grid-invariant operators (built once, outside the kernel) -----------
    eye_w = jnp.eye(W, dtype=f32)

    # 2x nearest upsample: rows (H x H0) and per-channel block-diag cols.
    u_h = (jnp.arange(H)[:, None] // 2 == jnp.arange(h0)[None, :]).astype(f32)
    sel_w = (jnp.arange(W)[None, :] // 2 == jnp.arange(w0)[:, None]).astype(f32)
    u_w = jnp.kron(jnp.eye(cin, dtype=f32), sel_w)                # (cin*W0, cin*W)

    # 3x3 avg-pool: tridiagonal-ones row operator and block-diag col operator.
    a_h = (jnp.abs(jnp.arange(H)[:, None] - jnp.arange(H)[None, :]) <= 1).astype(f32)
    band_w = (jnp.abs(jnp.arange(W)[:, None] - jnp.arange(W)[None, :]) <= 1).astype(f32)
    a_w = jnp.kron(jnp.eye(hid, dtype=f32), band_w)               # (hid*W, hid*W)

    # 1x1 conv (O,C) -> block matrix (C*W, O*W) acting on lane-packed slabs.
    def blk(w):
        return jnp.kron(w.T, eye_w).astype(f32)

    w_in_blk = blk(params["w_in"])                                              # (cin*W, hid*W)
    w_mid_blk = jnp.stack([blk(params["w_mid"][i * hid:(i + 1) * hid])
                           for i in range(width - 1)])                          # (width-1, hid*W, hid*W)
    w_ee_blk = jnp.stack([blk(params["w_ee"][i * hid:(i + 1) * hid])
                          for i in range(width - 1)])                           # (width-1, hid*W, hid*W)
    w_out_blk = jnp.stack([blk(params["w_out"][:, s * hid:(s + 1) * hid])
                           for s in range(width)])                              # (width, hid*W, cout*W)

    b_in_l = jnp.repeat(params["b_in"][0], W)[None, :]                          # (1, hid*W)
    b_mid_l = jnp.repeat(params["b_mid"], W, axis=1)                            # (width-1, hid*W)
    b_ee_l = jnp.repeat(params["b_ee"], W, axis=1)                              # (width-1, hid*W)
    b_out_l = jnp.repeat(params["b_out"][0], W)[None, :]                        # (1, cout*W)

    # Lane-dense packed input: (N, H0, Cin*W0) with slab[h, c*W0 + w] = x[c, h, w].
    x_packed = x.transpose(0, 2, 1, 3).reshape(n, h0, cin * w0)

    consts = (u_h, u_w, a_h, a_w, w_in_blk, b_in_l, w_mid_blk, b_mid_l,
              w_ee_blk, b_ee_l, w_out_blk, b_out_l)

    in_specs = [pl.BlockSpec((pl.Squeezed(), h0, cin * w0), lambda b: (b, 0, 0))]
    in_specs += [_const_spec(c) for c in consts]
    out_specs = pl.BlockSpec((pl.Squeezed(), H, cout * W), lambda b: (b, 0, 0))

    y_packed = pl.pallas_call(
        _meum_kernel,
        out_shape=jax.ShapeDtypeStruct((n, H, cout * W), jnp.float32),
        grid=(n,),
        in_specs=in_specs,
        out_specs=out_specs,
        compiler_params=pltpu.CompilerParams(dimension_semantics=("parallel",)),
    )(x_packed, *consts)

    # Back to NCHW.
    return y_packed.reshape(n, H, cout, W).transpose(0, 2, 1, 3)


# -----------------------------------------------------------------------------
# Pure-JAX reference with identical (eval-mode BN folded) semantics.
# -----------------------------------------------------------------------------
def meum_reference(x, params, *, width=4):
    n, cin, h0, w0 = x.shape
    hid = cin // 2
    x = jnp.repeat(jnp.repeat(x, 2, axis=2), 2, axis=3)

    def conv(v, w, b):
        return jnp.einsum('oc,nchw->nohw', w, v) + b[None, :, None, None]

    def pool(v):
        s = lax.reduce_window(v, 0.0, lax.add, (1, 1, 3, 3), (1, 1, 1, 1),
                              padding=((0, 0), (0, 0), (1, 1), (1, 1)))
        return s / 9.0

    mid = _sigmoid(conv(x, params["w_in"], params["b_in"][0]))
    out = mid
    for i in range(width - 1):
        mid = pool(mid)
        mid = _sigmoid(conv(mid, params["w_mid"][i * hid:(i + 1) * hid],
                            params["b_mid"][i]))
        edge = mid - pool(mid)
        edge = _sigmoid(conv(edge, params["w_ee"][i * hid:(i + 1) * hid],
                             params["b_ee"][i]))
        out = jnp.concatenate([out, mid + edge], axis=1)
    return jnp.maximum(conv(out, params["w_out"], params["b_out"][0]), 0.0)


def _make_bn(key, c):
    k1, k2, k3, k4 = jax.random.split(key, 4)
    gamma = 1.0 + 0.1 * jax.random.normal(k1, (c,), jnp.float32)
    beta = 0.1 * jax.random.normal(k2, (c,), jnp.float32)
    mean = 0.1 * jax.random.normal(k3, (c,), jnp.float32)
    var = 0.5 + jax.random.uniform(k4, (c,), jnp.float32)
    return gamma, beta, mean, var


if __name__ == "__main__":
    # MEUM(in_channels=8, out_channels=8), x: (2, 8, 16, 16)
    N, Cin, Cout, H0, W0 = 2, 8, 8, 16, 16
    width = 4
    hid = Cin // 2

    keys = jax.random.split(jax.random.PRNGKey(0), 20)

    # NOTE: BatchNorm is used in eval mode and folded into the 1x1 conv weights.
    w_in, b_in = _fold_bn(0.3 * jax.random.normal(keys[0], (hid, Cin), jnp.float32),
                          *_make_bn(keys[1], hid))
    w_mids, b_mids, w_ees, b_ees = [], [], [], []
    for i in range(width - 1):
        wm, bm = _fold_bn(0.3 * jax.random.normal(keys[2 + i], (hid, hid), jnp.float32),
                          *_make_bn(keys[5 + i], hid))
        we, be = _fold_bn(0.3 * jax.random.normal(keys[8 + i], (hid, hid), jnp.float32),
                          *_make_bn(keys[11 + i], hid))
        w_mids.append(wm); b_mids.append(bm); w_ees.append(we); b_ees.append(be)
    w_out, b_out = _fold_bn(
        0.3 * jax.random.normal(keys[14], (Cout, width * hid), jnp.float32),
        *_make_bn(keys[15], Cout))

    params = {
        "w_in": w_in, "b_in": b_in[None, :],
        "w_mid": jnp.concatenate(w_mids, axis=0), "b_mid": jnp.stack(b_mids, axis=0),
        "w_ee": jnp.concatenate(w_ees, axis=0), "b_ee": jnp.stack(b_ees, axis=0),
        "w_out": w_out, "b_out": b_out[None, :],
    }

    x = jax.random.normal(keys[16], (N, Cin, H0, W0), jnp.float32)

    y = meum_forward(x, params, width=width)
    jax.block_until_ready(y)

    y_ref = meum_reference(x, params, width=width)
    assert y.shape == (N, Cout, 2 * H0, 2 * W0)
    np.testing.assert_allclose(np.asarray(y), np.asarray(y_ref), rtol=5e-2, atol=5e-2)

    print("KERNEL_OK")
</pallas_src>

<mosaic_0001>
module attributes {stable_mosaic.version = 11 : i64} {
  func.func @_meum_kernel(%arg0: i32, %arg1: memref<1x16x128xf32, #tpu.memory_space<vmem>>, %arg2: memref<32x16xf32, #tpu.memory_space<vmem>>, %arg3: memref<128x256xf32, #tpu.memory_space<vmem>>, %arg4: memref<32x32xf32, #tpu.memory_space<vmem>>, %arg5: memref<128x128xf32, #tpu.memory_space<vmem>>, %arg6: memref<256x128xf32, #tpu.memory_space<vmem>>, %arg7: memref<1x128xf32, #tpu.memory_space<vmem>>, %arg8: memref<3x128x128xf32, #tpu.memory_space<vmem>>, %arg9: memref<3x128xf32, #tpu.memory_space<vmem>>, %arg10: memref<3x128x128xf32, #tpu.memory_space<vmem>>, %arg11: memref<3x128xf32, #tpu.memory_space<vmem>>, %arg12: memref<4x128x256xf32, #tpu.memory_space<vmem>>, %arg13: memref<1x256xf32, #tpu.memory_space<vmem>>, %arg14: memref<1x32x256xf32, #tpu.memory_space<vmem>>) attributes {dimension_semantics = [#tpu.dimension_semantics<parallel>], iteration_bounds = array<i64: 2>, scalar_prefetch = 0 : i64, scratch_operands = 0 : i64, tpu.core_type = #tpu.core_type<tc>, window_params = [{transform_indices = @transform_0, window_bounds = array<i64: 1, 16, 128>}, {pipeline_mode = #tpu.pipeline_mode<synchronous>, transform_indices = @transform_1, window_bounds = array<i64: 32, 16>}, {pipeline_mode = #tpu.pipeline_mode<synchronous>, transform_indices = @transform_2, window_bounds = array<i64: 128, 256>}, {pipeline_mode = #tpu.pipeline_mode<synchronous>, transform_indices = @transform_3, window_bounds = array<i64: 32, 32>}, {pipeline_mode = #tpu.pipeline_mode<synchronous>, transform_indices = @transform_4, window_bounds = array<i64: 128, 128>}, {pipeline_mode = #tpu.pipeline_mode<synchronous>, transform_indices = @transform_5, window_bounds = array<i64: 256, 128>}, {pipeline_mode = #tpu.pipeline_mode<synchronous>, transform_indices = @transform_6, window_bounds = array<i64: 1, 128>}, {pipeline_mode = #tpu.pipeline_mode<synchronous>, transform_indices = @transform_7, window_bounds = array<i64: 3, 128, 128>}, {pipeline_mode = #tpu.pipeline_mode<synchronous>, transform_indices = @transform_8, window_bounds = array<i64: 3, 128>}, {pipeline_mode = #tpu.pipeline_mode<synchronous>, transform_indices = @transform_9, window_bounds = array<i64: 3, 128, 128>}, {pipeline_mode = #tpu.pipeline_mode<synchronous>, transform_indices = @transform_10, window_bounds = array<i64: 3, 128>}, {pipeline_mode = #tpu.pipeline_mode<synchronous>, transform_indices = @transform_11, window_bounds = array<i64: 4, 128, 256>}, {pipeline_mode = #tpu.pipeline_mode<synchronous>, transform_indices = @transform_12, window_bounds = array<i64: 1, 256>}, {transform_indices = @transform_13, window_bounds = array<i64: 1, 32, 256>}]} {
    %c0 = arith.constant 0 : index
    %c0_0 = arith.constant 0 : index
    %0 = vector.load %arg4[%c0, %c0_0] : memref<32x32xf32, #tpu.memory_space<vmem>>, vector<32x32xf32>
    %c0_1 = arith.constant 0 : index
    %c0_2 = arith.constant 0 : index
    %1 = vector.load %arg5[%c0_1, %c0_2] : memref<128x128xf32, #tpu.memory_space<vmem>>, vector<128x128xf32>
    %c0_3 = arith.constant 0 : index
    %c0_4 = arith.constant 0 : index
    %2 = vector.load %arg2[%c0_3, %c0_4] : memref<32x16xf32, #tpu.memory_space<vmem>>, vector<32x16xf32>
    %c0_5 = arith.constant 0 : index
    %c0_6 = arith.constant 0 : index
    %c0_7 = arith.constant 0 : index
    %3 = vector.load %arg1[%c0_5, %c0_6, %c0_7] : memref<1x16x128xf32, #tpu.memory_space<vmem>>, vector<1x16x128xf32>
    %4 = vector.shape_cast %3 : vector<1x16x128xf32> to vector<16x128xf32>
    %cst = arith.constant dense<0.000000e+00> : vector<32x128xf32>
    %5 = tpu.matmul %2, %4, %cst {dimension_numbers = #tpu.dot_dimension_numbers<[1], [0], [0], [1], [0, 0, 1, 1], [], []>} : vector<32x16xf32>, vector<16x128xf32>, vector<32x128xf32> -> vector<32x128xf32>
    %c0_8 = arith.constant 0 : index
    %c0_9 = arith.constant 0 : index
    %6 = vector.load %arg3[%c0_8, %c0_9] : memref<128x256xf32, #tpu.memory_space<vmem>>, vector<128x256xf32>
    %cst_10 = arith.constant dense<0.000000e+00> : vector<32x256xf32>
    %7 = tpu.matmul %5, %6, %cst_10 {dimension_numbers = #tpu.dot_dimension_numbers<[1], [0], [0], [1], [0, 0, 1, 1], [], []>} : vector<32x128xf32>, vector<128x256xf32>, vector<32x256xf32> -> vector<32x256xf32>
    %c0_11 = arith.constant 0 : index
    %c0_12 = arith.constant 0 : index
    %8 = vector.load %arg6[%c0_11, %c0_12] : memref<256x128xf32, #tpu.memory_space<vmem>>, vector<256x128xf32>
    %cst_13 = arith.constant dense<0.000000e+00> : vector<32x128xf32>
    %9 = tpu.matmul %7, %8, %cst_13 {dimension_numbers = #tpu.dot_dimension_numbers<[1], [0], [0], [1], [0, 0, 1, 1], [], []>} : vector<32x256xf32>, vector<256x128xf32>, vector<32x128xf32> -> vector<32x128xf32>
    %c0_14 = arith.constant 0 : index
    %c0_15 = arith.constant 0 : index
    %10 = vector.load %arg7[%c0_14, %c0_15] : memref<1x128xf32, #tpu.memory_space<vmem>>, vector<1x128xf32>
    %11 = vector.broadcast %10 : vector<1x128xf32> to vector<32x128xf32>
    %12 = arith.addf %9, %11 : vector<32x128xf32>
    %cst_16 = arith.constant 0.000000e+00 : f32
    %13 = vector.broadcast %cst_16 : f32 to vector<32x128xf32>
    %14 = arith.subf %13, %12 : vector<32x128xf32>
    %15 = math.exp %14 : vector<32x128xf32>
    %cst_17 = arith.constant 1.000000e+00 : f32
    %16 = vector.broadcast %cst_17 : f32 to vector<32x128xf32>
    %17 = arith.addf %16, %15 : vector<32x128xf32>
    %18 = tpu.reciprocal %17 {approx = true} : vector<32x128xf32> -> vector<32x128xf32>
    %c0_18 = arith.constant 0 : index
    %c0_19 = arith.constant 0 : index
    %c0_20 = arith.constant 0 : index
    %19 = vector.load %arg12[%c0_18, %c0_19, %c0_20] : memref<4x128x256xf32, #tpu.memory_space<vmem>>, vector<1x128x256xf32>
    %20 = vector.shape_cast %19 : vector<1x128x256xf32> to vector<128x256xf32>
    %cst_21 = arith.constant dense<0.000000e+00> : vector<32x256xf32>
    %21 = tpu.matmul %18, %20, %cst_21 {dimension_numbers = #tpu.dot_dimension_numbers<[1], [0], [0], [1], [0, 0, 1, 1], [], []>} : vector<32x128xf32>, vector<128x256xf32>, vector<32x256xf32> -> vector<32x256xf32>
    %cst_22 = arith.constant dense<0.000000e+00> : vector<32x128xf32>
    %22 = tpu.matmul %0, %18, %cst_22 {dimension_numbers = #tpu.dot_dimension_numbers<[1], [0], [0], [1], [0, 0, 1, 1], [], []>} : vector<32x32xf32>, vector<32x128xf32>, vector<32x128xf32> -> vector<32x128xf32>
    %cst_23 = arith.constant dense<0.000000e+00> : vector<32x128xf32>
    %23 = tpu.matmul %22, %1, %cst_23 {dimension_numbers = #tpu.dot_dimension_numbers<[1], [0], [0], [1], [0, 0, 1, 1], [], []>} : vector<32x128xf32>, vector<128x128xf32>, vector<32x128xf32> -> vector<32x128xf32>
    %cst_24 = arith.constant 0.111111112 : f32
    %24 = vector.broadcast %cst_24 : f32 to vector<32x128xf32>
    %25 = arith.mulf %23, %24 : vector<32x128xf32>
    %c0_25 = arith.constant 0 : index
    %c0_26 = arith.constant 0 : index
    %c0_27 = arith.constant 0 : index
    %26 = vector.load %arg8[%c0_25, %c0_26, %c0_27] : memref<3x128x128xf32, #tpu.memory_space<vmem>>, vector<1x128x128xf32>
    %27 = vector.shape_cast %26 : vector<1x128x128xf32> to vector<128x128xf32>
    %cst_28 = arith.constant dense<0.000000e+00> : vector<32x128xf32>
    %28 = tpu.matmul %25, %27, %cst_28 {dimension_numbers = #tpu.dot_dimension_numbers<[1], [0], [0], [1], [0, 0, 1, 1], [], []>} : vector<32x128xf32>, vector<128x128xf32>, vector<32x128xf32> -> vector<32x128xf32>
    %c0_29 = arith.constant 0 : index
    %c0_30 = arith.constant 0 : index
    %29 = vector.load %arg9[%c0_29, %c0_30] : memref<3x128xf32, #tpu.memory_space<vmem>>, vector<1x128xf32>
    %30 = vector.broadcast %29 : vector<1x128xf32> to vector<32x128xf32>
    %31 = arith.addf %28, %30 : vector<32x128xf32>
    %cst_31 = arith.constant 0.000000e+00 : f32
    %32 = vector.broadcast %cst_31 : f32 to vector<32x128xf32>
    %33 = arith.subf %32, %31 : vector<32x128xf32>
    %34 = math.exp %33 : vector<32x128xf32>
    %cst_32 = arith.constant 1.000000e+00 : f32
    %35 = vector.broadcast %cst_32 : f32 to vector<32x128xf32>
    %36 = arith.addf %35, %34 : vector<32x128xf32>
    %37 = tpu.reciprocal %36 {approx = true} : vector<32x128xf32> -> vector<32x128xf32>
    %cst_33 = arith.constant dense<0.000000e+00> : vector<32x128xf32>
    %38 = tpu.matmul %0, %37, %cst_33 {dimension_numbers = #tpu.dot_dimension_numbers<[1], [0], [0], [1], [0, 0, 1, 1], [], []>} : vector<32x32xf32>, vector<32x128xf32>, vector<32x128xf32> -> vector<32x128xf32>
    %cst_34 = arith.constant dense<0.000000e+00> : vector<32x128xf32>
    %39 = tpu.matmul %38, %1, %cst_34 {dimension_numbers = #tpu.dot_dimension_numbers<[1], [0], [0], [1], [0, 0, 1, 1], [], []>} : vector<32x128xf32>, vector<128x128xf32>, vector<32x128xf32> -> vector<32x128xf32>
    %cst_35 = arith.constant 0.111111112 : f32
    %40 = vector.broadcast %cst_35 : f32 to vector<32x128xf32>
    %41 = arith.mulf %39, %40 : vector<32x128xf32>
    %42 = arith.subf %37, %41 : vector<32x128xf32>
    %c0_36 = arith.constant 0 : index
    %c0_37 = arith.constant 0 : index
    %c0_38 = arith.constant 0 : index
    %43 = vector.load %arg10[%c0_36, %c0_37, %c0_38] : memref<3x128x128xf32, #tpu.memory_space<vmem>>, vector<1x128x128xf32>
    %44 = vector.shape_cast %43 : vector<1x128x128xf32> to vector<128x128xf32>
    %cst_39 = arith.constant dense<0.000000e+00> : vector<32x128xf32>
    %45 = tpu.matmul %42, %44, %cst_39 {dimension_numbers = #tpu.dot_dimension_numbers<[1], [0], [0], [1], [0, 0, 1, 1], [], []>} : vector<32x128xf32>, vector<128x128xf32>, vector<32x128xf32> -> vector<32x128xf32>
    %c0_40 = arith.constant 0 : index
    %c0_41 = arith.constant 0 : index
    %46 = vector.load %arg11[%c0_40, %c0_41] : memref<3x128xf32, #tpu.memory_space<vmem>>, vector<1x128xf32>
    %47 = vector.broadcast %46 : vector<1x128xf32> to vector<32x128xf32>
    %48 = arith.addf %45, %47 : vector<32x128xf32>
    %cst_42 = arith.constant 0.000000e+00 : f32
    %49 = vector.broadcast %cst_42 : f32 to vector<32x128xf32>
    %50 = arith.subf %49, %48 : vector<32x128xf32>
    %51 = math.exp %50 : vector<32x128xf32>
    %cst_43 = arith.constant 1.000000e+00 : f32
    %52 = vector.broadcast %cst_43 : f32 to vector<32x128xf32>
    %53 = arith.addf %52, %51 : vector<32x128xf32>
    %54 = tpu.reciprocal %53 {approx = true} : vector<32x128xf32> -> vector<32x128xf32>
    %55 = arith.addf %37, %54 : vector<32x128xf32>
    %c1 = arith.constant 1 : index
    %c0_44 = arith.constant 0 : index
    %c0_45 = arith.constant 0 : index
    %56 = vector.load %arg12[%c1, %c0_44, %c0_45] : memref<4x128x256xf32, #tpu.memory_space<vmem>>, vector<1x128x256xf32>
    %57 = vector.shape_cast %56 : vector<1x128x256xf32> to vector<128x256xf32>
    %cst_46 = arith.constant dense<0.000000e+00> : vector<32x256xf32>
    %58 = tpu.matmul %55, %57, %cst_46 {dimension_numbers = #tpu.dot_dimension_numbers<[1], [0], [0], [1], [0, 0, 1, 1], [], []>} : vector<32x128xf32>, vector<128x256xf32>, vector<32x256xf32> -> vector<32x256xf32>
    %59 = arith.addf %21, %58 : vector<32x256xf32>
    %cst_47 = arith.constant dense<0.000000e+00> : vector<32x128xf32>
    %60 = tpu.matmul %0, %37, %cst_47 {dimension_numbers = #tpu.dot_dimension_numbers<[1], [0], [0], [1], [0, 0, 1, 1], [], []>} : vector<32x32xf32>, vector<32x128xf32>, vector<32x128xf32> -> vector<32x128xf32>
    %cst_48 = arith.constant dense<0.000000e+00> : vector<32x128xf32>
    %61 = tpu.matmul %60, %1, %cst_48 {dimension_numbers = #tpu.dot_dimension_numbers<[1], [0], [0], [1], [0, 0, 1, 1], [], []>} : vector<32x128xf32>, vector<128x128xf32>, vector<32x128xf32> -> vector<32x128xf32>
    %cst_49 = arith.constant 0.111111112 : f32
    %62 = vector.broadcast %cst_49 : f32 to vector<32x128xf32>
    %63 = arith.mulf %61, %62 : vector<32x128xf32>
    %c1_50 = arith.constant 1 : index
    %c0_51 = arith.constant 0 : index
    %c0_52 = arith.constant 0 : index
    %64 = vector.load %arg8[%c1_50, %c0_51, %c0_52] : memref<3x128x128xf32, #tpu.memory_space<vmem>>, vector<1x128x128xf32>
    %65 = vector.shape_cast %64 : vector<1x128x128xf32> to vector<128x128xf32>
    %cst_53 = arith.constant dense<0.000000e+00> : vector<32x128xf32>
    %66 = tpu.matmul %63, %65, %cst_53 {dimension_numbers = #tpu.dot_dimension_numbers<[1], [0], [0], [1], [0, 0, 1, 1], [], []>} : vector<32x128xf32>, vector<128x128xf32>, vector<32x128xf32> -> vector<32x128xf32>
    %c1_54 = arith.constant 1 : index
    %c0_55 = arith.constant 0 : index
    %67 = vector.load %arg9[%c1_54, %c0_55] : memref<3x128xf32, #tpu.memory_space<vmem>>, vector<1x128xf32>
    %68 = vector.broadcast %67 : vector<1x128xf32> to vector<32x128xf32>
    %69 = arith.addf %66, %68 : vector<32x128xf32>
    %cst_56 = arith.constant 0.000000e+00 : f32
    %70 = vector.broadcast %cst_56 : f32 to vector<32x128xf32>
    %71 = arith.subf %70, %69 : vector<32x128xf32>
    %72 = math.exp %71 : vector<32x128xf32>
    %cst_57 = arith.constant 1.000000e+00 : f32
    %73 = vector.broadcast %cst_57 : f32 to vector<32x128xf32>
    %74 = arith.addf %73, %72 : vector<32x128xf32>
    %75 = tpu.reciprocal %74 {approx = true} : vector<32x128xf32> -> vector<32x128xf32>
    %cst_58 = arith.constant dense<0.000000e+00> : vector<32x128xf32>
    %76 = tpu.matmul %0, %75, %cst_58 {dimension_numbers = #tpu.dot_dimension_numbers<[1], [0], [0], [1], [0, 0, 1, 1], [], []>} : vector<32x32xf32>, vector<32x128xf32>, vector<32x128xf32> -> vector<32x128xf32>
    %cst_59 = arith.constant dense<0.000000e+00> : vector<32x128xf32>
    %77 = tpu.matmul %76, %1, %cst_59 {dimension_numbers = #tpu.dot_dimension_numbers<[1], [0], [0], [1], [0, 0, 1, 1], [], []>} : vector<32x128xf32>, vector<128x128xf32>, vector<32x128xf32> -> vector<32x128xf32>
    %cst_60 = arith.constant 0.111111112 : f32
    %78 = vector.broadcast %cst_60 : f32 to vector<32x128xf32>
    %79 = arith.mulf %77, %78 : vector<32x128xf32>
    %80 = arith.subf %75, %79 : vector<32x128xf32>
    %c1_61 = arith.constant 1 : index
    %c0_62 = arith.constant 0 : index
    %c0_63 = arith.constant 0 : index
    %81 = vector.load %arg10[%c1_61, %c0_62, %c0_63] : memref<3x128x128xf32, #tpu.memory_space<vmem>>, vector<1x128x128xf32>
    %82 = vector.shape_cast %81 : vector<1x128x128xf32> to vector<128x128xf32>
    %cst_64 = arith.constant dense<0.000000e+00> : vector<32x128xf32>
    %83 = tpu.matmul %80, %82, %cst_64 {dimension_numbers = #tpu.dot_dimension_numbers<[1], [0], [0], [1], [0, 0, 1, 1], [], []>} : vector<32x128xf32>, vector<128x128xf32>, vector<32x128xf32> -> vector<32x128xf32>
    %c1_65 = arith.constant 1 : index
    %c0_66 = arith.constant 0 : index
    %84 = vector.load %arg11[%c1_65, %c0_66] : memref<3x128xf32, #tpu.memory_space<vmem>>, vector<1x128xf32>
    %85 = vector.broadcast %84 : vector<1x128xf32> to vector<32x128xf32>
    %86 = arith.addf %83, %85 : vector<32x128xf32>
    %cst_67 = arith.constant 0.000000e+00 : f32
    %87 = vector.broadcast %cst_67 : f32 to vector<32x128xf32>
    %88 = arith.subf %87, %86 : vector<32x128xf32>
    %89 = math.exp %88 : vector<32x128xf32>
    %cst_68 = arith.constant 1.000000e+00 : f32
    %90 = vector.broadcast %cst_68 : f32 to vector<32x128xf32>
    %91 = arith.addf %90, %89 : vector<32x128xf32>
    %92 = tpu.reciprocal %91 {approx = true} : vector<32x128xf32> -> vector<32x128xf32>
    %93 = arith.addf %75, %92 : vector<32x128xf32>
    %c2 = arith.constant 2 : index
    %c0_69 = arith.constant 0 : index
    %c0_70 = arith.constant 0 : index
    %94 = vector.load %arg12[%c2, %c0_69, %c0_70] : memref<4x128x256xf32, #tpu.memory_space<vmem>>, vector<1x128x256xf32>
    %95 = vector.shape_cast %94 : vector<1x128x256xf32> to vector<128x256xf32>
    %cst_71 = arith.constant dense<0.000000e+00> : vector<32x256xf32>
    %96 = tpu.matmul %93, %95, %cst_71 {dimension_numbers = #tpu.dot_dimension_numbers<[1], [0], [0], [1], [0, 0, 1, 1], [], []>} : vector<32x128xf32>, vector<128x256xf32>, vector<32x256xf32> -> vector<32x256xf32>
    %97 = arith.addf %59, %96 : vector<32x256xf32>
    %cst_72 = arith.constant dense<0.000000e+00> : vector<32x128xf32>
    %98 = tpu.matmul %0, %75, %cst_72 {dimension_numbers = #tpu.dot_dimension_numbers<[1], [0], [0], [1], [0, 0, 1, 1], [], []>} : vector<32x32xf32>, vector<32x128xf32>, vector<32x128xf32> -> vector<32x128xf32>
    %cst_73 = arith.constant dense<0.000000e+00> : vector<32x128xf32>
    %99 = tpu.matmul %98, %1, %cst_73 {dimension_numbers = #tpu.dot_dimension_numbers<[1], [0], [0], [1], [0, 0, 1, 1], [], []>} : vector<32x128xf32>, vector<128x128xf32>, vector<32x128xf32> -> vector<32x128xf32>
    %cst_74 = arith.constant 0.111111112 : f32
    %100 = vector.broadcast %cst_74 : f32 to vector<32x128xf32>
    %101 = arith.mulf %99, %100 : vector<32x128xf32>
    %c2_75 = arith.constant 2 : index
    %c0_76 = arith.constant 0 : index
    %c0_77 = arith.constant 0 : index
    %102 = vector.load %arg8[%c2_75, %c0_76, %c0_77] : memref<3x128x128xf32, #tpu.memory_space<vmem>>, vector<1x128x128xf32>
    %103 = vector.shape_cast %102 : vector<1x128x128xf32> to vector<128x128xf32>
    %cst_78 = arith.constant dense<0.000000e+00> : vector<32x128xf32>
    %104 = tpu.matmul %101, %103, %cst_78 {dimension_numbers = #tpu.dot_dimension_numbers<[1], [0], [0], [1], [0, 0, 1, 1], [], []>} : vector<32x128xf32>, vector<128x128xf32>, vector<32x128xf32> -> vector<32x128xf32>
    %c2_79 = arith.constant 2 : index
    %c0_80 = arith.constant 0 : index
    %105 = vector.load %arg9[%c2_79, %c0_80] : memref<3x128xf32, #tpu.memory_space<vmem>>, vector<1x128xf32>
    %106 = vector.broadcast %105 : vector<1x128xf32> to vector<32x128xf32>
    %107 = arith.addf %104, %106 : vector<32x128xf32>
    %cst_81 = arith.constant 0.000000e+00 : f32
    %108 = vector.broadcast %cst_81 : f32 to vector<32x128xf32>
    %109 = arith.subf %108, %107 : vector<32x128xf32>
    %110 = math.exp %109 : vector<32x128xf32>
    %cst_82 = arith.constant 1.000000e+00 : f32
    %111 = vector.broadcast %cst_82 : f32 to vector<32x128xf32>
    %112 = arith.addf %111, %110 : vector<32x128xf32>
    %113 = tpu.reciprocal %112 {approx = true} : vector<32x128xf32> -> vector<32x128xf32>
    %cst_83 = arith.constant dense<0.000000e+00> : vector<32x128xf32>
    %114 = tpu.matmul %0, %113, %cst_83 {dimension_numbers = #tpu.dot_dimension_numbers<[1], [0], [0], [1], [0, 0, 1, 1], [], []>} : vector<32x32xf32>, vector<32x128xf32>, vector<32x128xf32> -> vector<32x128xf32>
    %cst_84 = arith.constant dense<0.000000e+00> : vector<32x128xf32>
    %115 = tpu.matmul %114, %1, %cst_84 {dimension_numbers = #tpu.dot_dimension_numbers<[1], [0], [0], [1], [0, 0, 1, 1], [], []>} : vector<32x128xf32>, vector<128x128xf32>, vector<32x128xf32> -> vector<32x128xf32>
    %cst_85 = arith.constant 0.111111112 : f32
    %116 = vector.broadcast %cst_85 : f32 to vector<32x128xf32>
    %117 = arith.mulf %115, %116 : vector<32x128xf32>
    %118 = arith.subf %113, %117 : vector<32x128xf32>
    %c2_86 = arith.constant 2 : index
    %c0_87 = arith.constant 0 : index
    %c0_88 = arith.constant 0 : index
    %119 = vector.load %arg10[%c2_86, %c0_87, %c0_88] : memref<3x128x128xf32, #tpu.memory_space<vmem>>, vector<1x128x128xf32>
    %120 = vector.shape_cast %119 : vector<1x128x128xf32> to vector<128x128xf32>
    %cst_89 = arith.constant dense<0.000000e+00> : vector<32x128xf32>
    %121 = tpu.matmul %118, %120, %cst_89 {dimension_numbers = #tpu.dot_dimension_numbers<[1], [0], [0], [1], [0, 0, 1, 1], [], []>} : vector<32x128xf32>, vector<128x128xf32>, vector<32x128xf32> -> vector<32x128xf32>
    %c2_90 = arith.constant 2 : index
    %c0_91 = arith.constant 0 : index
    %122 = vector.load %arg11[%c2_90, %c0_91] : memref<3x128xf32, #tpu.memory_space<vmem>>, vector<1x128xf32>
    %123 = vector.broadcast %122 : vector<1x128xf32> to vector<32x128xf32>
    %124 = arith.addf %121, %123 : vector<32x128xf32>
    %cst_92 = arith.constant 0.000000e+00 : f32
    %125 = vector.broadcast %cst_92 : f32 to vector<32x128xf32>
    %126 = arith.subf %125, %124 : vector<32x128xf32>
    %127 = math.exp %126 : vector<32x128xf32>
    %cst_93 = arith.constant 1.000000e+00 : f32
    %128 = vector.broadcast %cst_93 : f32 to vector<32x128xf32>
    %129 = arith.addf %128, %127 : vector<32x128xf32>
    %130 = tpu.reciprocal %129 {approx = true} : vector<32x128xf32> -> vector<32x128xf32>
    %131 = arith.addf %113, %130 : vector<32x128xf32>
    %c3 = arith.constant 3 : index
    %c0_94 = arith.constant 0 : index
    %c0_95 = arith.constant 0 : index
    %132 = vector.load %arg12[%c3, %c0_94, %c0_95] : memref<4x128x256xf32, #tpu.memory_space<vmem>>, vector<1x128x256xf32>
    %133 = vector.shape_cast %132 : vector<1x128x256xf32> to vector<128x256xf32>
    %cst_96 = arith.constant dense<0.000000e+00> : vector<32x256xf32>
    %134 = tpu.matmul %131, %133, %cst_96 {dimension_numbers = #tpu.dot_dimension_numbers<[1], [0], [0], [1], [0, 0, 1, 1], [], []>} : vector<32x128xf32>, vector<128x256xf32>, vector<32x256xf32> -> vector<32x256xf32>
    %135 = arith.addf %97, %134 : vector<32x256xf32>
    %c0_97 = arith.constant 0 : index
    %c0_98 = arith.constant 0 : index
    %136 = vector.load %arg13[%c0_97, %c0_98] : memref<1x256xf32, #tpu.memory_space<vmem>>, vector<1x256xf32>
    %137 = vector.broadcast %136 : vector<1x256xf32> to vector<32x256xf32>
    %138 = arith.addf %135, %137 : vector<32x256xf32>
    %cst_99 = arith.constant 0.000000e+00 : f32
    %139 = vector.broadcast %cst_99 : f32 to vector<32x256xf32>
    %140 = arith.maximumf %138, %139 : vector<32x256xf32>
    %c0_100 = arith.constant 0 : index
    %c0_101 = arith.constant 0 : index
    %c0_102 = arith.constant 0 : index
    %141 = vector.load %arg14[%c0_100, %c0_101, %c0_102] : memref<1x32x256xf32, #tpu.memory_space<vmem>>, vector<1x32x256xf32>
    %142 = vector.shape_cast %141 : vector<1x32x256xf32> to vector<32x256xf32>
    %143 = vector.shape_cast %140 : vector<32x256xf32> to vector<1x32x256xf32>
    tpu.vector_store %arg14[%c0_100, %c0_101, %c0_102], %143 {strides = array<i32>} : memref<1x32x256xf32, #tpu.memory_space<vmem>>, vector<1x32x256xf32>,
    return
  }
  func.func @transform_0(%arg0: i32) -> (i32, i32, i32) {
    %c0_i32 = arith.constant 0 : i32
    %c0_i32_0 = arith.constant 0 : i32
    %c0_i32_1 = arith.constant 0 : i32
    return %arg0, %c0_i32, %c0_i32_0 : i32, i32, i32
  }
  func.func @transform_1(%arg0: i32) -> (i32, i32) {
    %c0_i32 = arith.constant 0 : i32
    %c0_i32_0 = arith.constant 0 : i32
    %c0_i32_1 = arith.constant 0 : i32
    return %c0_i32, %c0_i32_0 : i32, i32
  }
  func.func @transform_2(%arg0: i32) -> (i32, i32) {
    %c0_i32 = arith.constant 0 : i32
    %c0_i32_0 = arith.constant 0 : i32
    %c0_i32_1 = arith.constant 0 : i32
    return %c0_i32, %c0_i32_0 : i32, i32
  }
  func.func @transform_3(%arg0: i32) -> (i32, i32) {
    %c0_i32 = arith.constant 0 : i32
    %c0_i32_0 = arith.constant 0 : i32
    %c0_i32_1 = arith.constant 0 : i32
    return %c0_i32, %c0_i32_0 : i32, i32
  }
  func.func @transform_4(%arg0: i32) -> (i32, i32) {
    %c0_i32 = arith.constant 0 : i32
    %c0_i32_0 = arith.constant 0 : i32
    %c0_i32_1 = arith.constant 0 : i32
    return %c0_i32, %c0_i32_0 : i32, i32
  }
  func.func @transform_5(%arg0: i32) -> (i32, i32) {
    %c0_i32 = arith.constant 0 : i32
    %c0_i32_0 = arith.constant 0 : i32
    %c0_i32_1 = arith.constant 0 : i32
    return %c0_i32, %c0_i32_0 : i32, i32
  }
  func.func @transform_6(%arg0: i32) -> (i32, i32) {
    %c0_i32 = arith.constant 0 : i32
    %c0_i32_0 = arith.constant 0 : i32
    %c0_i32_1 = arith.constant 0 : i32
    return %c0_i32, %c0_i32_0 : i32, i32
  }
  func.func @transform_7(%arg0: i32) -> (i32, i32, i32) {
    %c0_i32 = arith.constant 0 : i32
    %c0_i32_0 = arith.constant 0 : i32
    %c0_i32_1 = arith.constant 0 : i32
    %c0_i32_2 = arith.constant 0 : i32
    return %c0_i32, %c0_i32_0, %c0_i32_1 : i32, i32, i32
  }
  func.func @transform_8(%arg0: i32) -> (i32, i32) {
    %c0_i32 = arith.constant 0 : i32
    %c0_i32_0 = arith.constant 0 : i32
    %c0_i32_1 = arith.constant 0 : i32
    return %c0_i32, %c0_i32_0 : i32, i32
  }
  func.func @transform_9(%arg0: i32) -> (i32, i32, i32) {
    %c0_i32 = arith.constant 0 : i32
    %c0_i32_0 = arith.constant 0 : i32
    %c0_i32_1 = arith.constant 0 : i32
    %c0_i32_2 = arith.constant 0 : i32
    return %c0_i32, %c0_i32_0, %c0_i32_1 : i32, i32, i32
  }
  func.func @transform_10(%arg0: i32) -> (i32, i32) {
    %c0_i32 = arith.constant 0 : i32
    %c0_i32_0 = arith.constant 0 : i32
    %c0_i32_1 = arith.constant 0 : i32
    return %c0_i32, %c0_i32_0 : i32, i32
  }
  func.func @transform_11(%arg0: i32) -> (i32, i32, i32) {
    %c0_i32 = arith.constant 0 : i32
    %c0_i32_0 = arith.constant 0 : i32
    %c0_i32_1 = arith.constant 0 : i32
    %c0_i32_2 = arith.constant 0 : i32
    return %c0_i32, %c0_i32_0, %c0_i32_1 : i32, i32, i32
  }
  func.func @transform_12(%arg0: i32) -> (i32, i32) {
    %c0_i32 = arith.constant 0 : i32
    %c0_i32_0 = arith.constant 0 : i32
    %c0_i32_1 = arith.constant 0 : i32
    return %c0_i32, %c0_i32_0 : i32, i32
  }
  func.func @transform_13(%arg0: i32) -> (i32, i32, i32) {
    %c0_i32 = arith.constant 0 : i32
    %c0_i32_0 = arith.constant 0 : i32
    %c0_i32_1 = arith.constant 0 : i32
    return %arg0, %c0_i32, %c0_i32_0 : i32, i32, i32
  }
}

</mosaic_0001>

<llo_original>
// kernel: tpu_custom_call.1
$region0: #{tpu_custom_call.1}
  #allocation0 [shape = 'u32[]', space=smem, size = 0x4, offset = 0x4, fixed_abs, tag = 'smem constant byte address 0x4 - core index']
  #allocation1 [shape = 'u32[72,128]{1,0:T(1,128)}', space=vmem, size = 0x9000, scoped, tag = 'internal scratch']
  %s0 = inlined_call_operand.vmem [shape: f32[2,16,128], index: 0, kind: input, shape index: {}]
  %s1 = inlined_call_operand.vmem [shape: f32[32,16], index: 1, kind: input, shape index: {}]
  %s2 = inlined_call_operand.hbm [shape: f32[128,256], index: 2, kind: input, shape index: {}]
  %s3 = inlined_call_operand.hbm [shape: f32[32,32], index: 3, kind: input, shape index: {}]
  %s4 = inlined_call_operand.hbm [shape: f32[128,128], index: 4, kind: input, shape index: {}]
  %s5 = inlined_call_operand.hbm [shape: f32[256,128], index: 5, kind: input, shape index: {}]
  %s6 = inlined_call_operand.vmem [shape: f32[1,128], index: 6, kind: input, shape index: {}]
  %s7 = inlined_call_operand.hbm [shape: f32[3,128,128], index: 7, kind: input, shape index: {}]
  %s8 = inlined_call_operand.vmem [shape: f32[3,128], index: 8, kind: input, shape index: {}]
  %s9 = inlined_call_operand.hbm [shape: f32[3,128,128], index: 9, kind: input, shape index: {}]
  %s10 = inlined_call_operand.vmem [shape: f32[3,128], index: 10, kind: input, shape index: {}]
  %s11 = inlined_call_operand.hbm [shape: f32[4,128,256], index: 11, kind: input, shape index: {}]
  %s12 = inlined_call_operand.vmem [shape: f32[1,256], index: 12, kind: input, shape index: {}]
  %s13 = inlined_call_operand.hbm [shape: f32[2,32,256], index: 13, kind: output, shape index: {}]
  %s14 = sld [smem:[#allocation0]]
  $region113: #{tpu_custom_call.1} parent=0
    _
  %s16 = ssub.s32 1, %s14
  %s17 = scalar_select 0, %s16, %s14
  $region1: #{tpu_custom_call.1} parent=0
    #allocation2 [shape = 'u8[131072]{0}', space=vmem, size = 0x20000, scoped, tag = 'input window, operand 2, single buffered']
    #allocation3 [shape = 's32[2]{0}', space=sflag, size = 0x8, scoped, tag = 'scoped memory for tpu_custom_call.1']
    #allocation4 [shape = 's32[2]{0}', space=sflag, size = 0x8, scoped, tag = 'scoped memory for tpu_custom_call.1']
    #allocation5 [shape = 'u8[16384]{0}', space=vmem, size = 0x4000, scoped, tag = 'input window, operand 3, single buffered']
    #allocation6 [shape = 's32[1]{0}', space=sflag, size = 0x4, scoped, tag = 'scoped memory for tpu_custom_call.1']
    #allocation7 [shape = 'u8[65536]{0}', space=vmem, size = 0x10000, scoped, tag = 'input window, operand 4, single buffered']
    #allocation8 [shape = 'u8[131072]{0}', space=vmem, size = 0x20000, scoped, tag = 'input window, operand 5, single buffered']
    #allocation9 [shape = 's32[1]{0}', space=sflag, size = 0x4, scoped, tag = 'scoped memory for tpu_custom_call.1']
    #allocation10 [shape = 'u8[196608]{0}', space=vmem, size = 0x30000, scoped, tag = 'input window, operand 7, single buffered']
    #allocation11 [shape = 'u8[196608]{0}', space=vmem, size = 0x30000, scoped, tag = 'input window, operand 9, single buffered']
    #allocation12 [shape = 's32[1]{0}', space=sflag, size = 0x4, scoped, tag = 'scoped memory for tpu_custom_call.1']
    #allocation13 [shape = 'u8[524288]{0}', space=vmem, size = 0x80000, scoped, tag = 'input window, operand 11, single buffered']
    #allocation14 [shape = 'u8[65536]{0}', space=vmem, size = 0x10000, scoped, tag = 'output window, operand 0']
    %18 = vsyncpa [#allocation3], 0
    %19 = vsyncpa [#allocation6], 0
    %20 = vsyncpa [#allocation9], 0
    %21 = vsyncpa [#allocation12], 0
    %22 = vsyncpa [#allocation4], 0
    %s23 = scalar_lea.sflag [#allocation4], 1
    %24 = vsyncpa %s23, 0
    loop: start=0, step=1, limit=4
    $region2: #{tpu_custom_call.1} parent=1 // loop_pre_header
      _
    $region3: #{tpu_custom_call.1} parent=1 // loop_header
      %s26 = sphi 0, %s30
      %p27 = scmp.ge.s32.totalorder %s26, 4
      %s36 = sphi 0, %s38
      %s39 = sphi 0, %s36
      %s40 = sphi 0, %s39
      %s56 = sphi 0, %s40
      %s60 = sphi 0, %s60
      %s62 = sphi 0, %s60
      %s63 = sphi 0, %s62
      %s77 = sphi 0, %s63
      %s81 = sphi 0, %s81
      %s83 = sphi 0, %s81
      %s84 = sphi 0, %s83
      %s98 = sphi 0, %s84
      %s102 = sphi 0, %s102
      %s104 = sphi 0, %s102
      %s105 = sphi 0, %s104
      %s119 = sphi 0, %s105
      %s123 = sphi 0, %s123
      %s125 = sphi 0, %s123
      %s126 = sphi 0, %s125
      %s140 = sphi 0, %s126
      %s144 = sphi 0, %s144
      %s146 = sphi 0, %s144
      %s147 = sphi 0, %s146
      %s161 = sphi 0, %s147
      %s165 = sphi 0, %s165
      %s167 = sphi 0, %s165
      %s168 = sphi 0, %s167
      %s182 = sphi 0, %s168
      %s186 = sphi 0, %s186
      %s188 = sphi 0, %s186
      %s189 = sphi 0, %s188
      %s203 = sphi 0, %s189
      %s207 = sphi 0, %s207
      %s209 = sphi 0, %s207
      %s210 = sphi 0, %s209
      %s224 = sphi 0, %s210
      %s228 = sphi 0, %s228
      %s230 = sphi 0, %s228
      %s231 = sphi 0, %s230
      %s245 = sphi 0, %s231
      %s249 = sphi 0, %s249
      %s251 = sphi 0, %s249
      %s252 = sphi 0, %s251
      %s266 = sphi 0, %s252
      %s270 = sphi 0, %s270
      %s272 = sphi 0, %s270
      %s273 = sphi 0, %s272
      %s287 = sphi 0, %s273
      %s291 = sphi 0, %s291
      %s293 = sphi 0, %s291
      %s294 = sphi 0, %s293
      %s308 = sphi 0, %s294
      %s314 = sphi 0, %s316
      %s317 = sphi 0, %s314
      %s318 = sphi 0, %s317
      %s334 = sphi 0, %s318
    $region4: #{tpu_custom_call.1} parent=1 // loop_header_branch
      %29 = sbr.rel (%p27) target = $region8
    $region5: #{tpu_custom_call.1} parent=1 // loop_body
      %s31 = ssub.s32 %s26, 1
      %s32 = ssub.s32 %s26, 2
      %s33 = sadd.s32 %s26, 1
      %s34 = ssub.s32 %s26, %s33
      %p35 = scmp.eq.s32.totalorder %s34, 0
      %s37 = sadd.s32 %s36, 1
      %s38 = scalar_select %p35, %s36, %s37
      %p41 = pneg %p35
      %p42 = scmp.eq.s32.totalorder %s26, 1
      %p43 = por %p41, %p42
      %p44 = scmp.ne.s32.totalorder %s36, %s39
      %p45 = scmp.eq.s32.totalorder %s26, 0
      %p46 = por %p44, %p45
      %p47 = scmp.ne.s32.totalorder %s36, %s39
      %p48 = scmp.eq.s32.totalorder %s31, 1
      %p49 = por %p47, %p48
      %p50 = scmp.ne.s32.totalorder %s39, %s40
      %p51 = scmp.eq.s32.totalorder %s31, 0
      %p52 = por %p50, %p51
      %p53 = scmp.ne.s32.totalorder %s39, %s40
      %p54 = scmp.eq.s32.totalorder %s32, 1
      %p55 = por %p53, %p54
      %p57 = scmp.ne.s32.totalorder %s40, %s56
      %p58 = scmp.eq.s32.totalorder %s32, 0
      %p59 = por %p57, %p58
      %s61 = sadd.s32 %s60, 1
      %p64 = scmp.eq.s32.totalorder %s26, 1
      %p65 = scmp.ne.s32.totalorder %s60, %s62
      %p66 = scmp.eq.s32.totalorder %s26, 0
      %p67 = por %p65, %p66
      %p68 = scmp.ne.s32.totalorder %s60, %s62
      %p69 = scmp.eq.s32.totalorder %s31, 1
      %p70 = por %p68, %p69
      %p71 = scmp.ne.s32.totalorder %s62, %s63
      %p72 = scmp.eq.s32.totalorder %s31, 0
      %p73 = por %p71, %p72
      %p74 = scmp.ne.s32.totalorder %s62, %s63
      %p75 = scmp.eq.s32.totalorder %s32, 1
      %p76 = por %p74, %p75
      %p78 = scmp.ne.s32.totalorder %s63, %s77
      %p79 = scmp.eq.s32.totalorder %s32, 0
      %p80 = por %p78, %p79
      %s82 = sadd.s32 %s81, 1
      %p85 = scmp.eq.s32.totalorder %s26, 1
      %p86 = scmp.ne.s32.totalorder %s81, %s83
      %p87 = scmp.eq.s32.totalorder %s26, 0
      %p88 = por %p86, %p87
      %p89 = scmp.ne.s32.totalorder %s81, %s83
      %p90 = scmp.eq.s32.totalorder %s31, 1
      %p91 = por %p89, %p90
      %p92 = scmp.ne.s32.totalorder %s83, %s84
      %p93 = scmp.eq.s32.totalorder %s31, 0
      %p94 = por %p92, %p93
      %p95 = scmp.ne.s32.totalorder %s83, %s84
      %p96 = scmp.eq.s32.totalorder %s32, 1
      %p97 = por %p95, %p96
      %p99 = scmp.ne.s32.totalorder %s84, %s98
      %p100 = scmp.eq.s32.totalorder %s32, 0
      %p101 = por %p99, %p100
      %s103 = sadd.s32 %s102, 1
      %p106 = scmp.eq.s32.totalorder %s26, 1
      %p107 = scmp.ne.s32.totalorder %s102, %s104
      %p108 = scmp.eq.s32.totalorder %s26, 0
      %p109 = por %p107, %p108
      %p110 = scmp.ne.s32.totalorder %s102, %s104
      %p111 = scmp.eq.s32.totalorder %s31, 1
      %p112 = por %p110, %p111
      %p113 = scmp.ne.s32.totalorder %s104, %s105
      %p114 = scmp.eq.s32.totalorder %s31, 0
      %p115 = por %p113, %p114
      %p116 = scmp.ne.s32.totalorder %s104, %s105
      %p117 = scmp.eq.s32.totalorder %s32, 1
      %p118 = por %p116, %p117
      %p120 = scmp.ne.s32.totalorder %s105, %s119
      %p121 = scmp.eq.s32.totalorder %s32, 0
      %p122 = por %p120, %p121
      %s124 = sadd.s32 %s123, 1
      %p127 = scmp.eq.s32.totalorder %s26, 1
      %p128 = scmp.ne.s32.totalorder %s123, %s125
      %p129 = scmp.eq.s32.totalorder %s26, 0
      %p130 = por %p128, %p129
      %p131 = scmp.ne.s32.totalorder %s123, %s125
      %p132 = scmp.eq.s32.totalorder %s31, 1
      %p133 = por %p131, %p132
      %p134 = scmp.ne.s32.totalorder %s125, %s126
      %p135 = scmp.eq.s32.totalorder %s31, 0
      %p136 = por %p134, %p135
      %p137 = scmp.ne.s32.totalorder %s125, %s126
      %p138 = scmp.eq.s32.totalorder %s32, 1
      %p139 = por %p137, %p138
      %p141 = scmp.ne.s32.totalorder %s126, %s140
      %p142 = scmp.eq.s32.totalorder %s32, 0
      %p143 = por %p141, %p142
      %s145 = sadd.s32 %s144, 1
      %p148 = scmp.eq.s32.totalorder %s26, 1
      %p149 = scmp.ne.s32.totalorder %s144, %s146
      %p150 = scmp.eq.s32.totalorder %s26, 0
      %p151 = por %p149, %p150
      %p152 = scmp.ne.s32.totalorder %s144, %s146
      %p153 = scmp.eq.s32.totalorder %s31, 1
      %p154 = por %p152, %p153
      %p155 = scmp.ne.s32.totalorder %s146, %s147
      %p156 = scmp.eq.s32.totalorder %s31, 0
      %p157 = por %p155, %p156
      %p158 = scmp.ne.s32.totalorder %s146, %s147
      %p159 = scmp.eq.s32.totalorder %s32, 1
      %p160 = por %p158, %p159
      %p162 = scmp.ne.s32.totalorder %s147, %s161
      %p163 = scmp.eq.s32.totalorder %s32, 0
      %p164 = por %p162, %p163
      %s166 = sadd.s32 %s165, 1
      %p169 = scmp.eq.s32.totalorder %s26, 1
      %p170 = scmp.ne.s32.totalorder %s165, %s167
      %p171 = scmp.eq.s32.totalorder %s26, 0
      %p172 = por %p170, %p171
      %p173 = scmp.ne.s32.totalorder %s165, %s167
      %p174 = scmp.eq.s32.totalorder %s31, 1
      %p175 = por %p173, %p174
      %p176 = scmp.ne.s32.totalorder %s167, %s168
      %p177 = scmp.eq.s32.totalorder %s31, 0
      %p178 = por %p176, %p177
      %p179 = scmp.ne.s32.totalorder %s167, %s168
      %p180 = scmp.eq.s32.totalorder %s32, 1
      %p181 = por %p179, %p180
      %p183 = scmp.ne.s32.totalorder %s168, %s182
      %p184 = scmp.eq.s32.totalorder %s32, 0
      %p185 = por %p183, %p184
      %s187 = sadd.s32 %s186, 1
      %p190 = scmp.eq.s32.totalorder %s26, 1
      %p191 = scmp.ne.s32.totalorder %s186, %s188
      %p192 = scmp.eq.s32.totalorder %s26, 0
      %p193 = por %p191, %p192
      %p194 = scmp.ne.s32.totalorder %s186, %s188
      %p195 = scmp.eq.s32.totalorder %s31, 1
      %p196 = por %p194, %p195
      %p197 = scmp.ne.s32.totalorder %s188, %s189
      %p198 = scmp.eq.s32.totalorder %s31, 0
      %p199 = por %p197, %p198
      %p200 = scmp.ne.s32.totalorder %s188, %s189
      %p201 = scmp.eq.s32.totalorder %s32, 1
      %p202 = por %p200, %p201
      %p204 = scmp.ne.s32.totalorder %s189, %s203
      %p205 = scmp.eq.s32.totalorder %s32, 0
      %p206 = por %p204, %p205
      %s208 = sadd.s32 %s207, 1
      %p211 = scmp.eq.s32.totalorder %s26, 1
      %p212 = scmp.ne.s32.totalorder %s207, %s209
      %p213 = scmp.eq.s32.totalorder %s26, 0
      %p214 = por %p212, %p213
      %p215 = scmp.ne.s32.totalorder %s207, %s209
      %p216 = scmp.eq.s32.totalorder %s31, 1
      %p217 = por %p215, %p216
      %p218 = scmp.ne.s32.totalorder %s209, %s210
      %p219 = scmp.eq.s32.totalorder %s31, 0
      %p220 = por %p218, %p219
      %p221 = scmp.ne.s32.totalorder %s209, %s210
      %p222 = scmp.eq.s32.totalorder %s32, 1
      %p223 = por %p221, %p222
      %p225 = scmp.ne.s32.totalorder %s210, %s224
      %p226 = scmp.eq.s32.totalorder %s32, 0
      %p227 = por %p225, %p226
      %s229 = sadd.s32 %s228, 1
      %p232 = scmp.eq.s32.totalorder %s26, 1
      %p233 = scmp.ne.s32.totalorder %s228, %s230
      %p234 = scmp.eq.s32.totalorder %s26, 0
      %p235 = por %p233, %p234
      %p236 = scmp.ne.s32.totalorder %s228, %s230
      %p237 = scmp.eq.s32.totalorder %s31, 1
      %p238 = por %p236, %p237
      %p239 = scmp.ne.s32.totalorder %s230, %s231
      %p240 = scmp.eq.s32.totalorder %s31, 0
      %p241 = por %p239, %p240
      %p242 = scmp.ne.s32.totalorder %s230, %s231
      %p243 = scmp.eq.s32.totalorder %s32, 1
      %p244 = por %p242, %p243
      %p246 = scmp.ne.s32.totalorder %s231, %s245
      %p247 = scmp.eq.s32.totalorder %s32, 0
      %p248 = por %p246, %p247
      %s250 = sadd.s32 %s249, 1
      %p253 = scmp.eq.s32.totalorder %s26, 1
      %p254 = scmp.ne.s32.totalorder %s249, %s251
      %p255 = scmp.eq.s32.totalorder %s26, 0
      %p256 = por %p254, %p255
      %p257 = scmp.ne.s32.totalorder %s249, %s251
      %p258 = scmp.eq.s32.totalorder %s31, 1
      %p259 = por %p257, %p258
      %p260 = scmp.ne.s32.totalorder %s251, %s252
      %p261 = scmp.eq.s32.totalorder %s31, 0
      %p262 = por %p260, %p261
      %p263 = scmp.ne.s32.totalorder %s251, %s252
      %p264 = scmp.eq.s32.totalorder %s32, 1
      %p265 = por %p263, %p264
      %p267 = scmp.ne.s32.totalorder %s252, %s266
      %p268 = scmp.eq.s32.totalorder %s32, 0
      %p269 = por %p267, %p268
      %s271 = sadd.s32 %s270, 1
      %p274 = scmp.eq.s32.totalorder %s26, 1
      %p275 = scmp.ne.s32.totalorder %s270, %s272
      %p276 = scmp.eq.s32.totalorder %s26, 0
      %p277 = por %p275, %p276
      %p278 = scmp.ne.s32.totalorder %s270, %s272
      %p279 = scmp.eq.s32.totalorder %s31, 1
      %p280 = por %p278, %p279
      %p281 = scmp.ne.s32.totalorder %s272, %s273
      %p282 = scmp.eq.s32.totalorder %s31, 0
      %p283 = por %p281, %p282
      %p284 = scmp.ne.s32.totalorder %s272, %s273
      %p285 = scmp.eq.s32.totalorder %s32, 1
      %p286 = por %p284, %p285
      %p288 = scmp.ne.s32.totalorder %s273, %s287
      %p289 = scmp.eq.s32.totalorder %s32, 0
      %p290 = por %p288, %p289
      %s292 = sadd.s32 %s291, 1
      %p295 = scmp.eq.s32.totalorder %s26, 1
      %p296 = scmp.ne.s32.totalorder %s291, %s293
      %p297 = scmp.eq.s32.totalorder %s26, 0
      %p298 = por %p296, %p297
      %p299 = scmp.ne.s32.totalorder %s291, %s293
      %p300 = scmp.eq.s32.totalorder %s31, 1
      %p301 = por %p299, %p300
      %p302 = scmp.ne.s32.totalorder %s293, %s294
      %p303 = scmp.eq.s32.totalorder %s31, 0
      %p304 = por %p302, %p303
      %p305 = scmp.ne.s32.totalorder %s293, %s294
      %p306 = scmp.eq.s32.totalorder %s32, 1
      %p307 = por %p305, %p306
      %p309 = scmp.ne.s32.totalorder %s294, %s308
      %p310 = scmp.eq.s32.totalorder %s32, 0
      %p311 = por %p309, %p310
      %s312 = ssub.s32 %s26, %s33
      %p313 = scmp.eq.s32.totalorder %s312, 0
      %s315 = sadd.s32 %s314, 1
      %s316 = scalar_select %p313, %s314, %s315
      %p319 = pneg %p313
      %p320 = scmp.eq.s32.totalorder %s26, 1
      %p321 = por %p319, %p320
      %p322 = scmp.ne.s32.totalorder %s314, %s317
      %p323 = scmp.eq.s32.totalorder %s26, 0
      %p324 = por %p322, %p323
      %p325 = scmp.ne.s32.totalorder %s314, %s317
      %p326 = scmp.eq.s32.totalorder %s31, 1
      %p327 = por %p325, %p326
      %p328 = scmp.ne.s32.totalorder %s317, %s318
      %p329 = scmp.eq.s32.totalorder %s31, 0
      %p330 = por %p328, %p329
      %p331 = scmp.ne.s32.totalorder %s317, %s318
      %p332 = scmp.eq.s32.totalorder %s32, 1
      %p333 = por %p331, %p332
      %p335 = scmp.ne.s32.totalorder %s318, %s334
      %p336 = scmp.eq.s32.totalorder %s32, 0
      %p337 = por %p335, %p336
      %p338 = scmp.le.s32.totalorder 1, %s26
      %p339 = scmp.lt.s32.totalorder %s26, 3
      %p340 = pnand %p338, %p339
      %p341 = pneg %p340
      // Predicated region
      $region9: #{tpu_custom_call.1} parent=5 // pred_check
        _
      $region10: #{tpu_custom_call.1} parent=5 // pred_check_branch
        %343 = sbr.rel (%p340) target = $region12
      $region11: #{tpu_custom_call.1} parent=5 // pred_region
        %s344 = ssub.s32 %s26, 1
        // Predicated region
        $region13: #{tpu_custom_call.1} parent=11 // pred_check
          %p345 = pneg %p73
        $region14: #{tpu_custom_call.1} parent=11 // pred_check_branch
          %347 = sbr.rel (%p345) target = $region16
        $region15: #{tpu_custom_call.1} parent=11 // pred_region
          _
        $region16: #{tpu_custom_call.1} parent=11 // pred_fallthru
          _
        // Predicated region
        $region17: #{tpu_custom_call.1} parent=11 // pred_check
          %p348 = pneg %p94
        $region18: #{tpu_custom_call.1} parent=11 // pred_check_branch
          %350 = sbr.rel (%p348) target = $region20
        $region19: #{tpu_custom_call.1} parent=11 // pred_region
          %352 = vsyncadd [#allocation3], 0
          %s353 = sshll.u32 %s2, 4
          %s354 = int_to_ptr.hbm [resolvable:$true] %s353
          %s355 = sshll.u32 [#allocation2], 4
          %s356 = int_to_ptr.vmem [resolvable:$true] %s355
          %361 = dma.hbm_to_vmem [thread:$0]  %s354, 4096, %s356, [#allocation3], 256, 256, 16
        $region20: #{tpu_custom_call.1} parent=11 // pred_fallthru
          _
        // Predicated region
        $region21: #{tpu_custom_call.1} parent=11 // pred_check
          %p362 = pneg %p115
        $region22: #{tpu_custom_call.1} parent=11 // pred_check_branch
          %364 = sbr.rel (%p362) target = $region24
        $region23: #{tpu_custom_call.1} parent=11 // pred_region
          %366 = vsyncadd [#allocation6], 0
          %s367 = sshll.u32 %s3, 4
          %s368 = int_to_ptr.hbm [resolvable:$true] %s367
          %s369 = sshll.u32 [#allocation5], 4
          %s370 = int_to_ptr.vmem [resolvable:$true] %s369
          %375 = dma.hbm_to_vmem [thread:$0]  %s368, 512, %s370, [#allocation6], 128, 128, 8
        $region24: #{tpu_custom_call.1} parent=11 // pred_fallthru
          _
        // Predicated region
        $region25: #{tpu_custom_call.1} parent=11 // pred_check
          %p376 = pneg %p136
        $region26: #{tpu_custom_call.1} parent=11 // pred_check_branch
          %378 = sbr.rel (%p376) target = $region28
        $region27: #{tpu_custom_call.1} parent=11 // pred_region
          %380 = vsyncadd [#allocation6], 0
          %s381 = sshll.u32 %s4, 4
          %s382 = int_to_ptr.hbm [resolvable:$true] %s381
          %s383 = sshll.u32 [#allocation7], 4
          %s384 = int_to_ptr.vmem [resolvable:$true] %s383
          %389 = dma.hbm_to_vmem [thread:$0]  %s382, 2048, %s384, [#allocation6], 128, 128, 8
        $region28: #{tpu_custom_call.1} parent=11 // pred_fallthru
          _
        // Predicated region
        $region29: #{tpu_custom_call.1} parent=11 // pred_check
          %p390 = pneg %p157
        $region30: #{tpu_custom_call.1} parent=11 // pred_check_branch
          %392 = sbr.rel (%p390) target = $region32
        $region31: #{tpu_custom_call.1} parent=11 // pred_region
          %394 = vsyncadd [#allocation9], 0
          %s395 = sshll.u32 %s5, 4
          %s396 = int_to_ptr.hbm [resolvable:$true] %s395
          %s397 = sshll.u32 [#allocation8], 4
          %s398 = int_to_ptr.vmem [resolvable:$true] %s397
          %403 = dma.hbm_to_vmem [thread:$0]  %s396, 4096, %s398, [#allocation9], 128, 128, 8
        $region32: #{tpu_custom_call.1} parent=11 // pred_fallthru
          _
        // Predicated region
        $region33: #{tpu_custom_call.1} parent=11 // pred_check
          %p404 = pneg %p178
        $region34: #{tpu_custom_call.1} parent=11 // pred_check_branch
          %406 = sbr.rel (%p404) target = $region36
        $region35: #{tpu_custom_call.1} parent=11 // pred_region
          _
        $region36: #{tpu_custom_call.1} parent=11 // pred_fallthru
          _
        // Predicated region
        $region37: #{tpu_custom_call.1} parent=11 // pred_check
          %p407 = pneg %p199
        $region38: #{tpu_custom_call.1} parent=11 // pred_check_branch
          %409 = sbr.rel (%p407) target = $region40
        $region39: #{tpu_custom_call.1} parent=11 // pred_region
          %411 = vsyncadd [#allocation9], 0
          %s412 = sshll.u32 %s7, 4
          %s413 = int_to_ptr.hbm [resolvable:$true] %s412
          %s414 = sshll.u32 [#allocation10], 4
          %s415 = int_to_ptr.vmem [resolvable:$true] %s414
          %420 = dma.hbm_to_vmem [thread:$0]  %s413, 6144, %s415, [#allocation9], 128, 128, 8
        $region40: #{tpu_custom_call.1} parent=11 // pred_fallthru
          _
        // Predicated region
        $region41: #{tpu_custom_call.1} parent=11 // pred_check
          %p421 = pneg %p220
        $region42: #{tpu_custom_call.1} parent=11 // pred_check_branch
          %423 = sbr.rel (%p421) target = $region44
        $region43: #{tpu_custom_call.1} parent=11 // pred_region
          _
        $region44: #{tpu_custom_call.1} parent=11 // pred_fallthru
          _
        // Predicated region
        $region45: #{tpu_custom_call.1} parent=11 // pred_check
          %p424 = pneg %p241
        $region46: #{tpu_custom_call.1} parent=11 // pred_check_branch
          %426 = sbr.rel (%p424) target = $region48
        $region47: #{tpu_custom_call.1} parent=11 // pred_region
          %428 = vsyncadd [#allocation12], 0
          %s429 = sshll.u32 %s9, 4
          %s430 = int_to_ptr.hbm [resolvable:$true] %s429
          %s431 = sshll.u32 [#allocation11], 4
          %s432 = int_to_ptr.vmem [resolvable:$true] %s431
          %437 = dma.hbm_to_vmem [thread:$0]  %s430, 6144, %s432, [#allocation12], 128, 128, 8
        $region48: #{tpu_custom_call.1} parent=11 // pred_fallthru
          _
        // Predicated region
        $region49: #{tpu_custom_call.1} parent=11 // pred_check
          %p438 = pneg %p262
        $region50: #{tpu_custom_call.1} parent=11 // pred_check_branch
          %440 = sbr.rel (%p438) target = $region52
        $region51: #{tpu_custom_call.1} parent=11 // pred_region
          _
        $region52: #{tpu_custom_call.1} parent=11 // pred_fallthru
          _
        // Predicated region
        $region53: #{tpu_custom_call.1} parent=11 // pred_check
          %p441 = pneg %p283
        $region54: #{tpu_custom_call.1} parent=11 // pred_check_branch
          %443 = sbr.rel (%p441) target = $region56
        $region55: #{tpu_custom_call.1} parent=11 // pred_region
          %445 = vsyncadd [#allocation12], 0
          %s446 = sshll.u32 %s11, 4
          %s447 = int_to_ptr.hbm [resolvable:$true] %s446
          %s448 = sshll.u32 [#allocation13], 4
          %s449 = int_to_ptr.vmem [resolvable:$true] %s448
          %454 = dma.hbm_to_vmem [thread:$0]  %s447, 16384, %s449, [#allocation12], 256, 256, 16
        $region56: #{tpu_custom_call.1} parent=11 // pred_fallthru
          _
        // Predicated region
        $region57: #{tpu_custom_call.1} parent=11 // pred_check
          %p455 = pneg %p304
        $region58: #{tpu_custom_call.1} parent=11 // pred_check_branch
          %457 = sbr.rel (%p455) target = $region60
        $region59: #{tpu_custom_call.1} parent=11 // pred_region
          _
        $region60: #{tpu_custom_call.1} parent=11 // pred_fallthru
          _
      $region12: #{tpu_custom_call.1} parent=5 // pred_fallthru
        _
      %p458 = scmp.lt.s32.totalorder %s26, 2
      // Predicated region
      $region61: #{tpu_custom_call.1} parent=5 // pred_check
        %p459 = pneg %p458
      $region62: #{tpu_custom_call.1} parent=5 // pred_check_branch
        %461 = sbr.rel (%p459) target = $region64
      $region63: #{tpu_custom_call.1} parent=5 // pred_region
        // Predicated region
        $region65: #{tpu_custom_call.1} parent=63 // pred_check
          %p462 = pneg %p46
        $region66: #{tpu_custom_call.1} parent=63 // pred_check_branch
          %464 = sbr.rel (%p462) target = $region68
        $region67: #{tpu_custom_call.1} parent=63 // pred_region
          %p465 = scmp.lt.s32.totalorder %s26, 1
          %s466 = scalar_select %p465, %s26, 1
          %s467 = smul.addr %s466, 2
          %s468 = smul.addr %s467, 8
          %s469 = scalar_lea.vmem %s0, %s468
        $region68: #{tpu_custom_call.1} parent=63 // pred_fallthru
          _
      $region64: #{tpu_custom_call.1} parent=5 // pred_fallthru
        _
      %p470 = scmp.le.s32.totalorder 1, %s26
      %p471 = scmp.lt.s32.totalorder %s26, 3
      %p472 = pnand %p470, %p471
      %p473 = pneg %p472
      // Predicated region
      $region69: #{tpu_custom_call.1} parent=5 // pred_check
        _
      $region70: #{tpu_custom_call.1} parent=5 // pred_check_branch
        %475 = sbr.rel (%p472) target = $region72
      $region71: #{tpu_custom_call.1} parent=5 // pred_region
        %s476 = ssub.s32 %s26, 1
        // Predicated region
        $region73: #{tpu_custom_call.1} parent=71 // pred_check
          %p477 = pneg %p94
        $region74: #{tpu_custom_call.1} parent=71 // pred_check_branch
          %479 = sbr.rel (%p477) target = $region76
        $region75: #{tpu_custom_call.1} parent=71 // pred_region
          %481 = dma.done [#allocation3], 4096
        $region76: #{tpu_custom_call.1} parent=71 // pred_fallthru
          _
        // Predicated region
        $region77: #{tpu_custom_call.1} parent=71 // pred_check
          %p482 = pneg %p115
        $region78: #{tpu_custom_call.1} parent=71 // pred_check_branch
          %484 = sbr.rel (%p482) target = $region80
        $region79: #{tpu_custom_call.1} parent=71 // pred_region
          %486 = dma.done [#allocation6], 512
        $region80: #{tpu_custom_call.1} parent=71 // pred_fallthru
          _
        // Predicated region
        $region81: #{tpu_custom_call.1} parent=71 // pred_check
          %p487 = pneg %p136
        $region82: #{tpu_custom_call.1} parent=71 // pred_check_branch
          %489 = sbr.rel (%p487) target = $region84
        $region83: #{tpu_custom_call.1} parent=71 // pred_region
          %491 = dma.done [#allocation6], 2048
        $region84: #{tpu_custom_call.1} parent=71 // pred_fallthru
          _
        // Predicated region
        $region85: #{tpu_custom_call.1} parent=71 // pred_check
          %p492 = pneg %p157
        $region86: #{tpu_custom_call.1} parent=71 // pred_check_branch
          %494 = sbr.rel (%p492) target = $region88
        $region87: #{tpu_custom_call.1} parent=71 // pred_region
          %496 = dma.done [#allocation9], 4096
        $region88: #{tpu_custom_call.1} parent=71 // pred_fallthru
          _
        // Predicated region
        $region89: #{tpu_custom_call.1} parent=71 // pred_check
          %p497 = pneg %p199
        $region90: #{tpu_custom_call.1} parent=71 // pred_check_branch
          %499 = sbr.rel (%p497) target = $region92
        $region91: #{tpu_custom_call.1} parent=71 // pred_region
          %501 = dma.done [#allocation9], 6144
        $region92: #{tpu_custom_call.1} parent=71 // pred_fallthru
          _
        // Predicated region
        $region93: #{tpu_custom_call.1} parent=71 // pred_check
          %p502 = pneg %p241
        $region94: #{tpu_custom_call.1} parent=71 // pred_check_branch
          %504 = sbr.rel (%p502) target = $region96
        $region95: #{tpu_custom_call.1} parent=71 // pred_region
          %506 = dma.done [#allocation12], 6144
        $region96: #{tpu_custom_call.1} parent=71 // pred_fallthru
          _
        // Predicated region
        $region97: #{tpu_custom_call.1} parent=71 // pred_check
          %p507 = pneg %p283
        $region98: #{tpu_custom_call.1} parent=71 // pred_check_branch
          %509 = sbr.rel (%p507) target = $region100
        $region99: #{tpu_custom_call.1} parent=71 // pred_region
          %511 = dma.done [#allocation12], 16384
        $region100: #{tpu_custom_call.1} parent=71 // pred_fallthru
          _
        %p512 = scmp.lt.s32.totalorder %s31, 1
        %s513 = scalar_select %p512, %s31, 1
        %s514 = smul.addr %s513, 2
        %s515 = smul.addr %s514, 8
        %s516 = scalar_lea.vmem %s0, %s515
        %p517 = pneg %p52
        %p518 = pneg %p49
        %p519 = pneg %p73
        %p520 = pneg %p70
        %p521 = pneg %p94
        %p522 = pneg %p91
        %p523 = pneg %p115
        %p524 = pneg %p112
        %p525 = pneg %p136
        %p526 = pneg %p133
        %p527 = pneg %p157
        %p528 = pneg %p154
        %p529 = pneg %p178
        %p530 = pneg %p175
        %p531 = pneg %p199
        %p532 = pneg %p196
        %p533 = pneg %p220
        %p534 = pneg %p217
        %p535 = pneg %p241
        %p536 = pneg %p238
        %p537 = pneg %p262
        %p538 = pneg %p259
        %p539 = pneg %p283
        %p540 = pneg %p280
        %p541 = pneg %p304
        %p542 = pneg %p301
        %p543 = pneg %p330
        %p544 = pneg %p327
        %s545 = sand.u32 %s317, 1
        %s546 = scalar_lea.sflag [#allocation4], %s545
        %s547 = sand.u32 %s317, 1
        %s548 = smul.addr %s547, 64
        %s549 = scalar_lea.vmem [#allocation14], %s548
        %p550 = scmp.lt.s32.totalorder %s31, 1
        %s551 = scalar_select %p550, %s31, 1
        %s552 = smul.addr %s551, 2
        %s553 = smul.addr %s552, 8
        %s554 = scalar_lea.vmem %s0, %s553
        %v555 = vld [vmem:[#allocation5] sm:$0xff]
        %v556 = vld [vmem:[#allocation5 + $0x8] sm:$0xff]
        %v557 = vld [vmem:[#allocation5 + $0x10] sm:$0xff]
        %v558 = vld [vmem:[#allocation5 + $0x18] sm:$0xff]
        %v559 = vld [vmem:[#allocation7] sm:$0xff]
        %v560 = vld [vmem:[#allocation7 + $0x8] sm:$0xff]
        %v561 = vld [vmem:[#allocation7 + $0x10] sm:$0xff]
        %v562 = vld [vmem:[#allocation7 + $0x18] sm:$0xff]
        %v563 = vld [vmem:[#allocation7 + $0x20] sm:$0xff]
        %v564 = vld [vmem:[#allocation7 + $0x28] sm:$0xff]
        %v565 = vld [vmem:[#allocation7 + $0x30] sm:$0xff]
        %v566 = vld [vmem:[#allocation7 + $0x38] sm:$0xff]
        %v567 = vld [vmem:[#allocation7 + $0x40] sm:$0xff]
        %v568 = vld [vmem:[#allocation7 + $0x48] sm:$0xff]
        %v569 = vld [vmem:[#allocation7 + $0x50] sm:$0xff]
        %v570 = vld [vmem:[#allocation7 + $0x58] sm:$0xff]
        %v571 = vld [vmem:[#allocation7 + $0x60] sm:$0xff]
        %v572 = vld [vmem:[#allocation7 + $0x68] sm:$0xff]
        %v573 = vld [vmem:[#allocation7 + $0x70] sm:$0xff]
        %v574 = vld [vmem:[#allocation7 + $0x78] sm:$0xff]
        %v575 = vld [vmem:[%s1] sm:$0xff]
        %v576 = vld [vmem:[%s1 + $0x8] sm:$0xff]
        %v577 = vld [vmem:[%s1 + $0x10] sm:$0xff]
        %v578 = vld [vmem:[%s1 + $0x18] sm:$0xff]
        %v579 = vld [vmem:[%s554] sm:$0xff]
        %v580 = vld [vmem:[%s554 + $0x8] sm:$0xff]
        %vm581 = vcmask 130048
        %v583 = vsel %vm581, %v575, 0
        %v586 = vsel %vm581, %v576, 0
        %v589 = vsel %vm581, %v577, 0
        %v592 = vsel %vm581, %v578, 0
        %594 = vmatpush.msra.mxu0 0.0
        %595 = vmatpush.msra.mxu0 0.0
        %596 = vmatpush.msra.mxu0 0.0
        %597 = vmatpush.msra.mxu0 0.0
        %598 = vmatpush.msra.mxu0 0.0
        %599 = vmatpush.msra.mxu0 0.0
        %600 = vmatpush.msra.mxu0 0.0
        %601 = vmatpush.msra.mxu0 0.0
        %602 = vmatpush.msra.mxu0 0.0
        %603 = vmatpush.msra.mxu0 0.0
        %604 = vmatpush.msra.mxu0 0.0
        %605 = vmatpush.msra.mxu0 0.0
        %606 = vmatpush.msra.mxu0 0.0
        %607 = vmatpush.msra.mxu0 0.0
        %608 = vmatpush.msra.mxu0 %v580
        %609 = vmatpush.msra.mxu0 %v579
        %610 = vmatmul.f32.gmra.mxu0 %v583
        %v611 = vpop.f32.mrf.mxu0
        %v612 = vadd.f32 0.0, %v611
        %613 = vmatmul.f32.gmra.mxu0 %v586
        %v614 = vpop.f32.mrf.mxu0
        %v615 = vadd.f32 0.0, %v614
        %616 = vmatmul.f32.gmra.mxu0 %v589
        %v617 = vpop.f32.mrf.mxu0
        %v618 = vadd.f32 0.0, %v617
        %619 = vmatmul.f32.gmra.mxu0 %v592
        %v620 = vpop.f32.mrf.mxu0
        %v621 = vadd.f32 0.0, %v620
        %622 = vdwg.mxu0
        %v623 = vld [vmem:[#allocation2] sm:$0xff]
        %v624 = vld [vmem:[#allocation2 + $0x8] sm:$0xff]
        %v625 = vld [vmem:[#allocation2 + $0x10] sm:$0xff]
        %v626 = vld [vmem:[#allocation2 + $0x18] sm:$0xff]
        %v627 = vld [vmem:[#allocation2 + $0x20] sm:$0xff]
        %v628 = vld [vmem:[#allocation2 + $0x28] sm:$0xff]
        %v629 = vld [vmem:[#allocation2 + $0x30] sm:$0xff]
        %v630 = vld [vmem:[#allocation2 + $0x38] sm:$0xff]
        %v631 = vld [vmem:[#allocation2 + $0x40] sm:$0xff]
        %v632 = vld [vmem:[#allocation2 + $0x48] sm:$0xff]
        %v633 = vld [vmem:[#allocation2 + $0x50] sm:$0xff]
        %v634 = vld [vmem:[#allocation2 + $0x58] sm:$0xff]
        %v635 = vld [vmem:[#allocation2 + $0x60] sm:$0xff]
        %v636 = vld [vmem:[#allocation2 + $0x68] sm:$0xff]
        %v637 = vld [vmem:[#allocation2 + $0x70] sm:$0xff]
        %v638 = vld [vmem:[#allocation2 + $0x78] sm:$0xff]
        %v639 = vld [vmem:[#allocation2 + $0x80] sm:$0xff]
        %v640 = vld [vmem:[#allocation2 + $0x88] sm:$0xff]
        %v641 = vld [vmem:[#allocation2 + $0x90] sm:$0xff]
        %v642 = vld [vmem:[#allocation2 + $0x98] sm:$0xff]
        %v643 = vld [vmem:[#allocation2 + $0xa0] sm:$0xff]
        %v644 = vld [vmem:[#allocation2 + $0xa8] sm:$0xff]
        %v645 = vld [vmem:[#allocation2 + $0xb0] sm:$0xff]
        %v646 = vld [vmem:[#allocation2 + $0xb8] sm:$0xff]
        %v647 = vld [vmem:[#allocation2 + $0xc0] sm:$0xff]
        %v648 = vld [vmem:[#allocation2 + $0xc8] sm:$0xff]
        %v649 = vld [vmem:[#allocation2 + $0xd0] sm:$0xff]
        %v650 = vld [vmem:[#allocation2 + $0xd8] sm:$0xff]
        %v651 = vld [vmem:[#allocation2 + $0xe0] sm:$0xff]
        %v652 = vld [vmem:[#allocation2 + $0xe8] sm:$0xff]
        %v653 = vld [vmem:[#allocation2 + $0xf0] sm:$0xff]
        %v654 = vld [vmem:[#allocation2 + $0xf8] sm:$0xff]
        %655 = vmatpush.msra.mxu0 %v653
        %656 = vmatpush.msra.mxu0 %v651
        %657 = vmatpush.msra.mxu0 %v649
        %658 = vmatpush.msra.mxu0 %v647
        %659 = vmatpush.msra.mxu0 %v645
        %660 = vmatpush.msra.mxu0 %v643
        %661 = vmatpush.msra.mxu0 %v641
        %662 = vmatpush.msra.mxu0 %v639
        %663 = vmatpush.msra.mxu0 %v637
        %664 = vmatpush.msra.mxu0 %v635
        %665 = vmatpush.msra.mxu0 %v633
        %666 = vmatpush.msra.mxu0 %v631
        %667 = vmatpush.msra.mxu0 %v629
        %668 = vmatpush.msra.mxu0 %v627
        %669 = vmatpush.msra.mxu0 %v625
        %670 = vmatpush.msra.mxu0 %v623
        %671 = vmatmul.f32.gmra.mxu0 %v612
        %v672 = vpop.f32.mrf.mxu0
        %v673 = vadd.f32 0.0, %v672
        %674 = vmatmul.f32.gmra.mxu0 %v615
        %v675 = vpop.f32.mrf.mxu0
        %v676 = vadd.f32 0.0, %v675
        %677 = vmatmul.f32.gmra.mxu0 %v618
        %v678 = vpop.f32.mrf.mxu0
        %v679 = vadd.f32 0.0, %v678
        %680 = vmatmul.f32.gmra.mxu0 %v621
        %v681 = vpop.f32.mrf.mxu0
        %v682 = vadd.f32 0.0, %v681
        %683 = vdwg.mxu0
        %684 = vmatpush.msra.mxu0 %v654
        %685 = vmatpush.msra.mxu0 %v652
        %686 = vmatpush.msra.mxu0 %v650
        %687 = vmatpush.msra.mxu0 %v648
        %688 = vmatpush.msra.mxu0 %v646
        %689 = vmatpush.msra.mxu0 %v644
        %690 = vmatpush.msra.mxu0 %v642
        %691 = vmatpush.msra.mxu0 %v640
        %692 = vmatpush.msra.mxu0 %v638
        %693 = vmatpush.msra.mxu0 %v636
        %694 = vmatpush.msra.mxu0 %v634
        %695 = vmatpush.msra.mxu0 %v632
        %696 = vmatpush.msra.mxu0 %v630
        %697 = vmatpush.msra.mxu0 %v628
        %698 = vmatpush.msra.mxu0 %v626
        %699 = vmatpush.msra.mxu0 %v624
        %700 = vmatmul.f32.gmra.mxu0 %v612
        %v701 = vpop.f32.mrf.mxu0
        %v702 = vadd.f32 0.0, %v701
        %703 = vmatmul.f32.gmra.mxu0 %v615
        %v704 = vpop.f32.mrf.mxu0
        %v705 = vadd.f32 0.0, %v704
        %706 = vmatmul.f32.gmra.mxu0 %v618
        %v707 = vpop.f32.mrf.mxu0
        %v708 = vadd.f32 0.0, %v707
        %709 = vmatmul.f32.gmra.mxu0 %v621
        %v710 = vpop.f32.mrf.mxu0
        %v711 = vadd.f32 0.0, %v710
        %712 = vdwg.mxu0
        %v713 = vld [vmem:[#allocation8] sm:$0xff]
        %v714 = vld [vmem:[#allocation8 + $0x8] sm:$0xff]
        %v715 = vld [vmem:[#allocation8 + $0x10] sm:$0xff]
        %v716 = vld [vmem:[#allocation8 + $0x18] sm:$0xff]
        %v717 = vld [vmem:[#allocation8 + $0x20] sm:$0xff]
        %v718 = vld [vmem:[#allocation8 + $0x28] sm:$0xff]
        %v719 = vld [vmem:[#allocation8 + $0x30] sm:$0xff]
        %v720 = vld [vmem:[#allocation8 + $0x38] sm:$0xff]
        %v721 = vld [vmem:[#allocation8 + $0x40] sm:$0xff]
        %v722 = vld [vmem:[#allocation8 + $0x48] sm:$0xff]
        %v723 = vld [vmem:[#allocation8 + $0x50] sm:$0xff]
        %v724 = vld [vmem:[#allocation8 + $0x58] sm:$0xff]
        %v725 = vld [vmem:[#allocation8 + $0x60] sm:$0xff]
        %v726 = vld [vmem:[#allocation8 + $0x68] sm:$0xff]
        %v727 = vld [vmem:[#allocation8 + $0x70] sm:$0xff]
        %v728 = vld [vmem:[#allocation8 + $0x78] sm:$0xff]
        %v729 = vld [vmem:[#allocation8 + $0x80] sm:$0xff]
        %v730 = vld [vmem:[#allocation8 + $0x88] sm:$0xff]
        %v731 = vld [vmem:[#allocation8 + $0x90] sm:$0xff]
        %v732 = vld [vmem:[#allocation8 + $0x98] sm:$0xff]
        %v733 = vld [vmem:[#allocation8 + $0xa0] sm:$0xff]
        %v734 = vld [vmem:[#allocation8 + $0xa8] sm:$0xff]
        %v735 = vld [vmem:[#allocation8 + $0xb0] sm:$0xff]
        %v736 = vld [vmem:[#allocation8 + $0xb8] sm:$0xff]
        %v737 = vld [vmem:[#allocation8 + $0xc0] sm:$0xff]
        %v738 = vld [vmem:[#allocation8 + $0xc8] sm:$0xff]
        %v739 = vld [vmem:[#allocation8 + $0xd0] sm:$0xff]
        %v740 = vld [vmem:[#allocation8 + $0xd8] sm:$0xff]
        %v741 = vld [vmem:[#allocation8 + $0xe0] sm:$0xff]
        %v742 = vld [vmem:[#allocation8 + $0xe8] sm:$0xff]
        %v743 = vld [vmem:[#allocation8 + $0xf0] sm:$0xff]
        %v744 = vld [vmem:[#allocation8 + $0xf8] sm:$0xff]
        %v745 = vld [vmem:[%s6] sm:$0x1]
        %v747 = vperm.slane %v745, 0
        %749 = vmatpush.msra.mxu0 %v728
        %750 = vmatpush.msra.mxu0 %v727
        %751 = vmatpush.msra.mxu0 %v726
        %752 = vmatpush.msra.mxu0 %v725
        %753 = vmatpush.msra.mxu0 %v724
        %754 = vmatpush.msra.mxu0 %v723
        %755 = vmatpush.msra.mxu0 %v722
        %756 = vmatpush.msra.mxu0 %v721
        %757 = vmatpush.msra.mxu0 %v720
        %758 = vmatpush.msra.mxu0 %v719
        %759 = vmatpush.msra.mxu0 %v718
        %760 = vmatpush.msra.mxu0 %v717
        %761 = vmatpush.msra.mxu0 %v716
        %762 = vmatpush.msra.mxu0 %v715
        %763 = vmatpush.msra.mxu0 %v714
        %764 = vmatpush.msra.mxu0 %v713
        %765 = vmatmul.f32.gmra.mxu0 %v673
        %v766 = vpop.f32.mrf.mxu0
        %v767 = vadd.f32 %v747, %v766
        %768 = vmatmul.f32.gmra.mxu0 %v676
        %v769 = vpop.f32.mrf.mxu0
        %v770 = vadd.f32 %v747, %v769
        %771 = vmatmul.f32.gmra.mxu0 %v679
        %v772 = vpop.f32.mrf.mxu0
        %v773 = vadd.f32 %v747, %v772
        %774 = vmatmul.f32.gmra.mxu0 %v682
        %v775 = vpop.f32.mrf.mxu0
        %v776 = vadd.f32 %v747, %v775
        %777 = vdwg.mxu0
        %778 = vmatpush.msra.mxu0 %v744
        %779 = vmatpush.msra.mxu0 %v743
        %780 = vmatpush.msra.mxu0 %v742
        %781 = vmatpush.msra.mxu0 %v741
        %782 = vmatpush.msra.mxu0 %v740
        %783 = vmatpush.msra.mxu0 %v739
        %784 = vmatpush.msra.mxu0 %v738
        %785 = vmatpush.msra.mxu0 %v737
        %786 = vmatpush.msra.mxu0 %v736
        %787 = vmatpush.msra.mxu0 %v735
        %788 = vmatpush.msra.mxu0 %v734
        %789 = vmatpush.msra.mxu0 %v733
        %790 = vmatpush.msra.mxu0 %v732
        %791 = vmatpush.msra.mxu0 %v731
        %792 = vmatpush.msra.mxu0 %v730
        %793 = vmatpush.msra.mxu0 %v729
        %794 = vmatmul.f32.gmra.mxu0 %v702
        %v795 = vpop.f32.mrf.mxu0
        %v796 = vadd.f32 %v767, %v795
        %797 = vmatmul.f32.gmra.mxu0 %v705
        %v798 = vpop.f32.mrf.mxu0
        %v799 = vadd.f32 %v770, %v798
        %800 = vmatmul.f32.gmra.mxu0 %v708
        %v801 = vpop.f32.mrf.mxu0
        %v802 = vadd.f32 %v773, %v801
        %803 = vmatmul.f32.gmra.mxu0 %v711
        %v804 = vpop.f32.mrf.mxu0
        %v805 = vadd.f32 %v776, %v804
        %806 = vdwg.mxu0
        %v807 = vsub.f32 0.0, %v796
        %v808 = vsub.f32 0.0, %v799
        %v809 = vsub.f32 0.0, %v802
        %v810 = vsub.f32 0.0, %v805
        %v811 = vmul.f32 %v807, 1.442695
        %v812 = vpow.pop %v811
        %v813 = vmul.f32 %v808, 1.442695
        %v814 = vpow.pop %v813
        %v815 = vmul.f32 %v809, 1.442695
        %v816 = vpow.pop %v815
        %v817 = vmul.f32 %v810, 1.442695
        %v818 = vpow.pop %v817
        %v819 = vadd.f32 %v812, 1.0
        %v820 = vadd.f32 %v814, 1.0
        %v821 = vadd.f32 %v816, 1.0
        %v822 = vadd.f32 %v818, 1.0
        %v823 = vrcp.pop %v819
        %v824 = vrcp.pop %v820
        %v825 = vrcp.pop %v821
        %v826 = vrcp.pop %v822
        %v827 = vld [vmem:[#allocation13] sm:$0xff]
        %v828 = vld [vmem:[#allocation13 + $0x8] sm:$0xff]
        %v829 = vld [vmem:[#allocation13 + $0x10] sm:$0xff]
        %v830 = vld [vmem:[#allocation13 + $0x18] sm:$0xff]
        %v831 = vld [vmem:[#allocation13 + $0x20] sm:$0xff]
        %v832 = vld [vmem:[#allocation13 + $0x28] sm:$0xff]
        %v833 = vld [vmem:[#allocation13 + $0x30] sm:$0xff]
        %v834 = vld [vmem:[#allocation13 + $0x38] sm:$0xff]
        %v835 = vld [vmem:[#allocation13 + $0x40] sm:$0xff]
        %v836 = vld [vmem:[#allocation13 + $0x48] sm:$0xff]
        %v837 = vld [vmem:[#allocation13 + $0x50] sm:$0xff]
        %v838 = vld [vmem:[#allocation13 + $0x58] sm:$0xff]
        %v839 = vld [vmem:[#allocation13 + $0x60] sm:$0xff]
        %v840 = vld [vmem:[#allocation13 + $0x68] sm:$0xff]
        %v841 = vld [vmem:[#allocation13 + $0x70] sm:$0xff]
        %v842 = vld [vmem:[#allocation13 + $0x78] sm:$0xff]
        %v843 = vld [vmem:[#allocation13 + $0x80] sm:$0xff]
        %v844 = vld [vmem:[#allocation13 + $0x88] sm:$0xff]
        %v845 = vld [vmem:[#allocation13 + $0x90] sm:$0xff]
        %v846 = vld [vmem:[#allocation13 + $0x98] sm:$0xff]
        %v847 = vld [vmem:[#allocation13 + $0xa0] sm:$0xff]
        %v848 = vld [vmem:[#allocation13 + $0xa8] sm:$0xff]
        %v849 = vld [vmem:[#allocation13 + $0xb0] sm:$0xff]
        %v850 = vld [vmem:[#allocation13 + $0xb8] sm:$0xff]
        %v851 = vld [vmem:[#allocation13 + $0xc0] sm:$0xff]
        %v852 = vld [vmem:[#allocation13 + $0xc8] sm:$0xff]
        %v853 = vld [vmem:[#allocation13 + $0xd0] sm:$0xff]
        %v854 = vld [vmem:[#allocation13 + $0xd8] sm:$0xff]
        %v855 = vld [vmem:[#allocation13 + $0xe0] sm:$0xff]
        %v856 = vld [vmem:[#allocation13 + $0xe8] sm:$0xff]
        %v857 = vld [vmem:[#allocation13 + $0xf0] sm:$0xff]
        %v858 = vld [vmem:[#allocation13 + $0xf8] sm:$0xff]
        %vm859 = vcmask 261120
        %v861 = vsel %vm859, %v555, 0
        %v864 = vsel %vm859, %v556, 0
        %v867 = vsel %vm859, %v557, 0
        %v870 = vsel %vm859, %v558, 0
        %872 = vmatpush.msra.mxu0 0.0
        %873 = vmatpush.msra.mxu0 0.0
        %874 = vmatpush.msra.mxu0 0.0
        %875 = vmatpush.msra.mxu0 0.0
        %876 = vmatpush.msra.mxu0 0.0
        %877 = vmatpush.msra.mxu0 0.0
        %878 = vmatpush.msra.mxu0 0.0
        %879 = vmatpush.msra.mxu0 0.0
        %880 = vmatpush.msra.mxu0 0.0
        %881 = vmatpush.msra.mxu0 0.0
        %882 = vmatpush.msra.mxu0 0.0
        %883 = vmatpush.msra.mxu0 0.0
        %884 = vmatpush.msra.mxu0 %v826
        %885 = vmatpush.msra.mxu0 %v825
        %886 = vmatpush.msra.mxu0 %v824
        %887 = vmatpush.msra.mxu0 %v823
        %888 = vmatmul.f32.gmra.mxu0 %v861
        %v889 = vpop.f32.mrf.mxu0
        %v890 = vadd.f32 0.0, %v889
        %891 = vmatmul.f32.gmra.mxu0 %v864
        %v892 = vpop.f32.mrf.mxu0
        %v893 = vadd.f32 0.0, %v892
        %894 = vmatmul.f32.gmra.mxu0 %v867
        %v895 = vpop.f32.mrf.mxu0
        %v896 = vadd.f32 0.0, %v895
        %897 = vmatmul.f32.gmra.mxu0 %v870
        %v898 = vpop.f32.mrf.mxu0
        %v899 = vadd.f32 0.0, %v898
        %900 = vdwg.mxu0
        %901 = vmatpush.msra.mxu0 %v574
        %902 = vmatpush.msra.mxu0 %v573
        %903 = vmatpush.msra.mxu0 %v572
        %904 = vmatpush.msra.mxu0 %v571
        %905 = vmatpush.msra.mxu0 %v570
        %906 = vmatpush.msra.mxu0 %v569
        %907 = vmatpush.msra.mxu0 %v568
        %908 = vmatpush.msra.mxu0 %v567
        %909 = vmatpush.msra.mxu0 %v566
        %910 = vmatpush.msra.mxu0 %v565
        %911 = vmatpush.msra.mxu0 %v564
        %912 = vmatpush.msra.mxu0 %v563
        %913 = vmatpush.msra.mxu0 %v562
        %914 = vmatpush.msra.mxu0 %v561
        %915 = vmatpush.msra.mxu0 %v560
        %916 = vmatpush.msra.mxu0 %v559
        %917 = vmatmul.f32.gmra.mxu0 %v890
        %v918 = vpop.f32.mrf.mxu0
        %v919 = vadd.f32 0.0, %v918
        %920 = vmatmul.f32.gmra.mxu0 %v893
        %v921 = vpop.f32.mrf.mxu0
        %v922 = vadd.f32 0.0, %v921
        %923 = vmatmul.f32.gmra.mxu0 %v896
        %v924 = vpop.f32.mrf.mxu0
        %v925 = vadd.f32 0.0, %v924
        %926 = vmatmul.f32.gmra.mxu0 %v899
        %v927 = vpop.f32.mrf.mxu0
        %v928 = vadd.f32 0.0, %v927
        %929 = vdwg.mxu0
        %v930 = vmul.f32 %v919, 0.11111111
        %v931 = vmul.f32 %v922, 0.11111111
        %v932 = vmul.f32 %v925, 0.11111111
        %v933 = vmul.f32 %v928, 0.11111111
        %v934 = vld [vmem:[#allocation10] sm:$0xff]
        %v935 = vld [vmem:[#allocation10 + $0x8] sm:$0xff]
        %v936 = vld [vmem:[#allocation10 + $0x10] sm:$0xff]
        %v937 = vld [vmem:[#allocation10 + $0x18] sm:$0xff]
        %v938 = vld [vmem:[#allocation10 + $0x20] sm:$0xff]
        %v939 = vld [vmem:[#allocation10 + $0x28] sm:$0xff]
        %v940 = vld [vmem:[#allocation10 + $0x30] sm:$0xff]
        %v941 = vld [vmem:[#allocation10 + $0x38] sm:$0xff]
        %v942 = vld [vmem:[#allocation10 + $0x40] sm:$0xff]
        %v943 = vld [vmem:[#allocation10 + $0x48] sm:$0xff]
        %v944 = vld [vmem:[#allocation10 + $0x50] sm:$0xff]
        %v945 = vld [vmem:[#allocation10 + $0x58] sm:$0xff]
        %v946 = vld [vmem:[#allocation10 + $0x60] sm:$0xff]
        %v947 = vld [vmem:[#allocation10 + $0x68] sm:$0xff]
        %v948 = vld [vmem:[#allocation10 + $0x70] sm:$0xff]
        %v949 = vld [vmem:[#allocation10 + $0x78] sm:$0xff]
        %v950 = vld [vmem:[%s8] sm:$0x1]
        %v951 = vperm.slane %v950, 0
        %952 = vmatpush.msra.mxu0 %v949
        %953 = vmatpush.msra.mxu0 %v948
        %954 = vmatpush.msra.mxu0 %v947
        %955 = vmatpush.msra.mxu0 %v946
        %956 = vmatpush.msra.mxu0 %v945
        %957 = vmatpush.msra.mxu0 %v944
        %958 = vmatpush.msra.mxu0 %v943
        %959 = vmatpush.msra.mxu0 %v942
        %960 = vmatpush.msra.mxu0 %v941
        %961 = vmatpush.msra.mxu0 %v940
        %962 = vmatpush.msra.mxu0 %v939
        %963 = vmatpush.msra.mxu0 %v938
        %964 = vmatpush.msra.mxu0 %v937
        %965 = vmatpush.msra.mxu0 %v936
        %966 = vmatpush.msra.mxu0 %v935
        %967 = vmatpush.msra.mxu0 %v934
        %968 = vmatmul.f32.gmra.mxu0 %v930
        %v969 = vpop.f32.mrf.mxu0
        %v970 = vadd.f32 %v951, %v969
        %971 = vmatmul.f32.gmra.mxu0 %v931
        %v972 = vpop.f32.mrf.mxu0
        %v973 = vadd.f32 %v951, %v972
        %974 = vmatmul.f32.gmra.mxu0 %v932
        %v975 = vpop.f32.mrf.mxu0
        %v976 = vadd.f32 %v951, %v975
        %977 = vmatmul.f32.gmra.mxu0 %v933
        %v978 = vpop.f32.mrf.mxu0
        %v979 = vadd.f32 %v951, %v978
        %980 = vdwg.mxu0
        %v981 = vsub.f32 0.0, %v970
        %v982 = vsub.f32 0.0, %v973
        %v983 = vsub.f32 0.0, %v976
        %v984 = vsub.f32 0.0, %v979
        %v985 = vmul.f32 %v981, 1.442695
        %v986 = vpow.pop %v985
        %v987 = vmul.f32 %v982, 1.442695
        %v988 = vpow.pop %v987
        %v989 = vmul.f32 %v983, 1.442695
        %v990 = vpow.pop %v989
        %v991 = vmul.f32 %v984, 1.442695
        %v992 = vpow.pop %v991
        %v993 = vadd.f32 %v986, 1.0
        %v994 = vadd.f32 %v988, 1.0
        %v995 = vadd.f32 %v990, 1.0
        %v996 = vadd.f32 %v992, 1.0
        %v997 = vrcp.pop %v993
        %v998 = vrcp.pop %v994
        %v999 = vrcp.pop %v995
        %v1000 = vrcp.pop %v996
        %1001 = vmatpush.msra.mxu0 0.0
        %1002 = vmatpush.msra.mxu0 0.0
        %1003 = vmatpush.msra.mxu0 0.0
        %1004 = vmatpush.msra.mxu0 0.0
        %1005 = vmatpush.msra.mxu0 0.0
        %1006 = vmatpush.msra.mxu0 0.0
        %1007 = vmatpush.msra.mxu0 0.0
        %1008 = vmatpush.msra.mxu0 0.0
        %1009 = vmatpush.msra.mxu0 0.0
        %1010 = vmatpush.msra.mxu0 0.0
        %1011 = vmatpush.msra.mxu0 0.0
        %1012 = vmatpush.msra.mxu0 0.0
        %1013 = vmatpush.msra.mxu0 %v1000
        %1014 = vmatpush.msra.mxu0 %v999
        %1015 = vmatpush.msra.mxu0 %v998
        %1016 = vmatpush.msra.mxu0 %v997
        %1017 = vmatmul.f32.gmra.mxu0 %v861
        %v1018 = vpop.f32.mrf.mxu0
        %v1019 = vadd.f32 0.0, %v1018
        %1020 = vmatmul.f32.gmra.mxu0 %v864
        %v1021 = vpop.f32.mrf.mxu0
        %v1022 = vadd.f32 0.0, %v1021
        %1023 = vmatmul.f32.gmra.mxu0 %v867
        %v1024 = vpop.f32.mrf.mxu0
        %v1025 = vadd.f32 0.0, %v1024
        %1026 = vmatmul.f32.gmra.mxu0 %v870
        %v1027 = vpop.f32.mrf.mxu0
        %v1028 = vadd.f32 0.0, %v1027
        %1029 = vdwg.mxu0
        %1030 = vmatpush.msra.mxu0 %v574
        %1031 = vmatpush.msra.mxu0 %v573
        %1032 = vmatpush.msra.mxu0 %v572
        %1033 = vmatpush.msra.mxu0 %v571
        %1034 = vmatpush.msra.mxu0 %v570
        %1035 = vmatpush.msra.mxu0 %v569
        %1036 = vmatpush.msra.mxu0 %v568
        %1037 = vmatpush.msra.mxu0 %v567
        %1038 = vmatpush.msra.mxu0 %v566
        %1039 = vmatpush.msra.mxu0 %v565
        %1040 = vmatpush.msra.mxu0 %v564
        %1041 = vmatpush.msra.mxu0 %v563
        %1042 = vmatpush.msra.mxu0 %v562
        %1043 = vmatpush.msra.mxu0 %v561
        %1044 = vmatpush.msra.mxu0 %v560
        %1045 = vmatpush.msra.mxu0 %v559
        %1046 = vmatmul.f32.gmra.mxu0 %v1019
        %v1047 = vpop.f32.mrf.mxu0
        %v1048 = vadd.f32 0.0, %v1047
        %1049 = vmatmul.f32.gmra.mxu0 %v1022
        %v1050 = vpop.f32.mrf.mxu0
        %v1051 = vadd.f32 0.0, %v1050
        %1052 = vmatmul.f32.gmra.mxu0 %v1025
        %v1053 = vpop.f32.mrf.mxu0
        %v1054 = vadd.f32 0.0, %v1053
        %1055 = vmatmul.f32.gmra.mxu0 %v1028
        %v1056 = vpop.f32.mrf.mxu0
        %v1057 = vadd.f32 0.0, %v1056
        %1058 = vdwg.mxu0
        %v1059 = vmul.f32 %v1048, 0.11111111
        %v1060 = vmul.f32 %v1051, 0.11111111
        %v1061 = vmul.f32 %v1054, 0.11111111
        %v1062 = vmul.f32 %v1057, 0.11111111
        %v1063 = vsub.f32 %v997, %v1059
        %v1064 = vsub.f32 %v998, %v1060
        %v1065 = vsub.f32 %v999, %v1061
        %v1066 = vsub.f32 %v1000, %v1062
        %v1067 = vld [vmem:[#allocation11] sm:$0xff]
        %v1068 = vld [vmem:[#allocation11 + $0x8] sm:$0xff]
        %v1069 = vld [vmem:[#allocation11 + $0x10] sm:$0xff]
        %v1070 = vld [vmem:[#allocation11 + $0x18] sm:$0xff]
        %v1071 = vld [vmem:[#allocation11 + $0x20] sm:$0xff]
        %v1072 = vld [vmem:[#allocation11 + $0x28] sm:$0xff]
        %v1073 = vld [vmem:[#allocation11 + $0x30] sm:$0xff]
        %v1074 = vld [vmem:[#allocation11 + $0x38] sm:$0xff]
        %v1075 = vld [vmem:[#allocation11 + $0x40] sm:$0xff]
        %v1076 = vld [vmem:[#allocation11 + $0x48] sm:$0xff]
        %v1077 = vld [vmem:[#allocation11 + $0x50] sm:$0xff]
        %v1078 = vld [vmem:[#allocation11 + $0x58] sm:$0xff]
        %v1079 = vld [vmem:[#allocation11 + $0x60] sm:$0xff]
        %v1080 = vld [vmem:[#allocation11 + $0x68] sm:$0xff]
        %v1081 = vld [vmem:[#allocation11 + $0x70] sm:$0xff]
        %v1082 = vld [vmem:[#allocation11 + $0x78] sm:$0xff]
        %v1083 = vld [vmem:[%s10] sm:$0x1]
        %v1084 = vperm.slane %v1083, 0
        %1085 = vmatpush.msra.mxu0 %v1082
        %1086 = vmatpush.msra.mxu0 %v1081
        %1087 = vmatpush.msra.mxu0 %v1080
        %1088 = vmatpush.msra.mxu0 %v1079
        %1089 = vmatpush.msra.mxu0 %v1078
        %1090 = vmatpush.msra.mxu0 %v1077
        %1091 = vmatpush.msra.mxu0 %v1076
        %1092 = vmatpush.msra.mxu0 %v1075
        %1093 = vmatpush.msra.mxu0 %v1074
        %1094 = vmatpush.msra.mxu0 %v1073
        %1095 = vmatpush.msra.mxu0 %v1072
        %1096 = vmatpush.msra.mxu0 %v1071
        %1097 = vmatpush.msra.mxu0 %v1070
        %1098 = vmatpush.msra.mxu0 %v1069
        %1099 = vmatpush.msra.mxu0 %v1068
        %1100 = vmatpush.msra.mxu0 %v1067
        %1101 = vmatmul.f32.gmra.mxu0 %v1063
        %v1102 = vpop.f32.mrf.mxu0
        %v1103 = vadd.f32 %v1084, %v1102
        %1104 = vmatmul.f32.gmra.mxu0 %v1064
        %v1105 = vpop.f32.mrf.mxu0
        %v1106 = vadd.f32 %v1084, %v1105
        %1107 = vmatmul.f32.gmra.mxu0 %v1065
        %v1108 = vpop.f32.mrf.mxu0
        %v1109 = vadd.f32 %v1084, %v1108
        %1110 = vmatmul.f32.gmra.mxu0 %v1066
        %v1111 = vpop.f32.mrf.mxu0
        %v1112 = vadd.f32 %v1084, %v1111
        %1113 = vdwg.mxu0
        %v1114 = vsub.f32 0.0, %v1103
        %v1115 = vsub.f32 0.0, %v1106
        %v1116 = vsub.f32 0.0, %v1109
        %v1117 = vsub.f32 0.0, %v1112
        %v1118 = vmul.f32 %v1114, 1.442695
        %v1119 = vpow.pop %v1118
        %v1120 = vmul.f32 %v1115, 1.442695
        %v1121 = vpow.pop %v1120
        %v1122 = vmul.f32 %v1116, 1.442695
        %v1123 = vpow.pop %v1122
        %v1124 = vmul.f32 %v1117, 1.442695
        %v1125 = vpow.pop %v1124
        %v1126 = vadd.f32 %v1119, 1.0
        %v1127 = vadd.f32 %v1121, 1.0
        %v1128 = vadd.f32 %v1123, 1.0
        %v1129 = vadd.f32 %v1125, 1.0
        %v1130 = vrcp.pop %v1126
        %v1131 = vrcp.pop %v1127
        %v1132 = vrcp.pop %v1128
        %v1133 = vrcp.pop %v1129
        %v1134 = vadd.f32 %v997, %v1130
        %v1135 = vadd.f32 %v998, %v1131
        %v1136 = vadd.f32 %v999, %v1132
        %v1137 = vadd.f32 %v1000, %v1133
        %s1138 = scalar_lea.vmem [#allocation13], 256
        %v1139 = vld [vmem:[%s1138] sm:$0xff]
        %v1140 = vld [vmem:[%s1138 + $0x8] sm:$0xff]
        %v1141 = vld [vmem:[%s1138 + $0x10] sm:$0xff]
        %v1142 = vld [vmem:[%s1138 + $0x18] sm:$0xff]
        %v1143 = vld [vmem:[%s1138 + $0x20] sm:$0xff]
        %v1144 = vld [vmem:[%s1138 + $0x28] sm:$0xff]
        %v1145 = vld [vmem:[%s1138 + $0x30] sm:$0xff]
        %v1146 = vld [vmem:[%s1138 + $0x38] sm:$0xff]
        %v1147 = vld [vmem:[%s1138 + $0x40] sm:$0xff]
        %v1148 = vld [vmem:[%s1138 + $0x48] sm:$0xff]
        %v1149 = vld [vmem:[%s1138 + $0x50] sm:$0xff]
        %v1150 = vld [vmem:[%s1138 + $0x58] sm:$0xff]
        %v1151 = vld [vmem:[%s1138 + $0x60] sm:$0xff]
        %v1152 = vld [vmem:[%s1138 + $0x68] sm:$0xff]
        %v1153 = vld [vmem:[%s1138 + $0x70] sm:$0xff]
        %v1154 = vld [vmem:[%s1138 + $0x78] sm:$0xff]
        %v1155 = vld [vmem:[%s1138 + $0x80] sm:$0xff]
        %v1156 = vld [vmem:[%s1138 + $0x88] sm:$0xff]
        %v1157 = vld [vmem:[%s1138 + $0x90] sm:$0xff]
        %v1158 = vld [vmem:[%s1138 + $0x98] sm:$0xff]
        %v1159 = vld [vmem:[%s1138 + $0xa0] sm:$0xff]
        %v1160 = vld [vmem:[%s1138 + $0xa8] sm:$0xff]
        %v1161 = vld [vmem:[%s1138 + $0xb0] sm:$0xff]
        %v1162 = vld [vmem:[%s1138 + $0xb8] sm:$0xff]
        %v1163 = vld [vmem:[%s1138 + $0xc0] sm:$0xff]
        %v1164 = vld [vmem:[%s1138 + $0xc8] sm:$0xff]
        %v1165 = vld [vmem:[%s1138 + $0xd0] sm:$0xff]
        %v1166 = vld [vmem:[%s1138 + $0xd8] sm:$0xff]
        %v1167 = vld [vmem:[%s1138 + $0xe0] sm:$0xff]
        %v1168 = vld [vmem:[%s1138 + $0xe8] sm:$0xff]
        %v1169 = vld [vmem:[%s1138 + $0xf0] sm:$0xff]
        %v1170 = vld [vmem:[%s1138 + $0xf8] sm:$0xff]
        %1171 = vmatpush.msra.mxu0 %v1169
        %1172 = vmatpush.msra.mxu0 %v1167
        %1173 = vmatpush.msra.mxu0 %v1165
        %1174 = vmatpush.msra.mxu0 %v1163
        %1175 = vmatpush.msra.mxu0 %v1161
        %1176 = vmatpush.msra.mxu0 %v1159
        %1177 = vmatpush.msra.mxu0 %v1157
        %1178 = vmatpush.msra.mxu0 %v1155
        %1179 = vmatpush.msra.mxu0 %v1153
        %1180 = vmatpush.msra.mxu0 %v1151
        %1181 = vmatpush.msra.mxu0 %v1149
        %1182 = vmatpush.msra.mxu0 %v1147
        %1183 = vmatpush.msra.mxu0 %v1145
        %1184 = vmatpush.msra.mxu0 %v1143
        %1185 = vmatpush.msra.mxu0 %v1141
        %1186 = vmatpush.msra.mxu0 %v1139
        %1187 = vmatmul.f32.gmra.mxu0 %v1134
        %v1188 = vpop.f32.mrf.mxu0
        %v1189 = vadd.f32 0.0, %v1188
        %1190 = vmatmul.f32.gmra.mxu0 %v1135
        %v1191 = vpop.f32.mrf.mxu0
        %v1192 = vadd.f32 0.0, %v1191
        %1193 = vmatmul.f32.gmra.mxu0 %v1136
        %v1194 = vpop.f32.mrf.mxu0
        %v1195 = vadd.f32 0.0, %v1194
        %1196 = vmatmul.f32.gmra.mxu0 %v1137
        %v1197 = vpop.f32.mrf.mxu0
        %v1198 = vadd.f32 0.0, %v1197
        %1199 = vdwg.mxu0
        %1200 = vmatpush.msra.mxu0 %v1170
        %1201 = vmatpush.msra.mxu0 %v1168
        %1202 = vmatpush.msra.mxu0 %v1166
        %1203 = vmatpush.msra.mxu0 %v1164
        %1204 = vmatpush.msra.mxu0 %v1162
        %1205 = vmatpush.msra.mxu0 %v1160
        %1206 = vmatpush.msra.mxu0 %v1158
        %1207 = vmatpush.msra.mxu0 %v1156
        %1208 = vmatpush.msra.mxu0 %v1154
        %1209 = vmatpush.msra.mxu0 %v1152
        %1210 = vmatpush.msra.mxu0 %v1150
        %1211 = vmatpush.msra.mxu0 %v1148
        %1212 = vmatpush.msra.mxu0 %v1146
        %1213 = vmatpush.msra.mxu0 %v1144
        %1214 = vmatpush.msra.mxu0 %v1142
        %1215 = vmatpush.msra.mxu0 %v1140
        %1216 = vmatmul.f32.gmra.mxu0 %v1134
        %v1217 = vpop.f32.mrf.mxu0
        %v1218 = vadd.f32 0.0, %v1217
        %1219 = vmatmul.f32.gmra.mxu0 %v1135
        %v1220 = vpop.f32.mrf.mxu0
        %v1221 = vadd.f32 0.0, %v1220
        %1222 = vmatmul.f32.gmra.mxu0 %v1136
        %v1223 = vpop.f32.mrf.mxu0
        %v1224 = vadd.f32 0.0, %v1223
        %1225 = vmatmul.f32.gmra.mxu0 %v1137
        %v1226 = vpop.f32.mrf.mxu0
        %v1227 = vadd.f32 0.0, %v1226
        %1228 = vdwg.mxu0
        %1229 = vmatpush.msra.mxu0 %v857
        %1230 = vmatpush.msra.mxu0 %v855
        %1231 = vmatpush.msra.mxu0 %v853
        %1232 = vmatpush.msra.mxu0 %v851
        %1233 = vmatpush.msra.mxu0 %v849
        %1234 = vmatpush.msra.mxu0 %v847
        %1235 = vmatpush.msra.mxu0 %v845
        %1236 = vmatpush.msra.mxu0 %v843
        %1237 = vmatpush.msra.mxu0 %v841
        %1238 = vmatpush.msra.mxu0 %v839
        %1239 = vmatpush.msra.mxu0 %v837
        %1240 = vmatpush.msra.mxu0 %v835
        %1241 = vmatpush.msra.mxu0 %v833
        %1242 = vmatpush.msra.mxu0 %v831
        %1243 = vmatpush.msra.mxu0 %v829
        %1244 = vmatpush.msra.mxu0 %v827
        %1245 = vmatmul.f32.gmra.mxu0 %v823
        %v1246 = vpop.f32.mrf.mxu0
        %v1247 = vadd.f32 %v1189, %v1246
        %1248 = vmatmul.f32.gmra.mxu0 %v824
        %v1249 = vpop.f32.mrf.mxu0
        %v1250 = vadd.f32 %v1192, %v1249
        %1251 = vmatmul.f32.gmra.mxu0 %v825
        %v1252 = vpop.f32.mrf.mxu0
        %v1253 = vadd.f32 %v1195, %v1252
        %1254 = vmatmul.f32.gmra.mxu0 %v826
        %v1255 = vpop.f32.mrf.mxu0
        %v1256 = vadd.f32 %v1198, %v1255
        %1257 = vdwg.mxu0
        %1258 = vmatpush.msra.mxu0 %v858
        %1259 = vmatpush.msra.mxu0 %v856
        %1260 = vmatpush.msra.mxu0 %v854
        %1261 = vmatpush.msra.mxu0 %v852
        %1262 = vmatpush.msra.mxu0 %v850
        %1263 = vmatpush.msra.mxu0 %v848
        %1264 = vmatpush.msra.mxu0 %v846
        %1265 = vmatpush.msra.mxu0 %v844
        %1266 = vmatpush.msra.mxu0 %v842
        %1267 = vmatpush.msra.mxu0 %v840
        %1268 = vmatpush.msra.mxu0 %v838
        %1269 = vmatpush.msra.mxu0 %v836
        %1270 = vmatpush.msra.mxu0 %v834
        %1271 = vmatpush.msra.mxu0 %v832
        %1272 = vmatpush.msra.mxu0 %v830
        %1273 = vmatpush.msra.mxu0 %v828
        %1274 = vmatmul.f32.gmra.mxu0 %v823
        %v1275 = vpop.f32.mrf.mxu0
        %v1276 = vadd.f32 %v1218, %v1275
        %1277 = vmatmul.f32.gmra.mxu0 %v824
        %v1278 = vpop.f32.mrf.mxu0
        %v1279 = vadd.f32 %v1221, %v1278
        %1280 = vmatmul.f32.gmra.mxu0 %v825
        %v1281 = vpop.f32.mrf.mxu0
        %v1282 = vadd.f32 %v1224, %v1281
        %1283 = vmatmul.f32.gmra.mxu0 %v826
        %v1284 = vpop.f32.mrf.mxu0
        %v1285 = vadd.f32 %v1227, %v1284
        %1286 = vdwg.mxu0
        %s1287 = scalar_lea.vmem [#allocation10], 128
        %v1288 = vld [vmem:[%s1287] sm:$0xff]
        %v1289 = vld [vmem:[%s1287 + $0x8] sm:$0xff]
        %v1290 = vld [vmem:[%s1287 + $0x10] sm:$0xff]
        %v1291 = vld [vmem:[%s1287 + $0x18] sm:$0xff]
        %v1292 = vld [vmem:[%s1287 + $0x20] sm:$0xff]
        %v1293 = vld [vmem:[%s1287 + $0x28] sm:$0xff]
        %v1294 = vld [vmem:[%s1287 + $0x30] sm:$0xff]
        %v1295 = vld [vmem:[%s1287 + $0x38] sm:$0xff]
        %v1296 = vld [vmem:[%s1287 + $0x40] sm:$0xff]
        %v1297 = vld [vmem:[%s1287 + $0x48] sm:$0xff]
        %v1298 = vld [vmem:[%s1287 + $0x50] sm:$0xff]
        %v1299 = vld [vmem:[%s1287 + $0x58] sm:$0xff]
        %v1300 = vld [vmem:[%s1287 + $0x60] sm:$0xff]
        %v1301 = vld [vmem:[%s1287 + $0x68] sm:$0xff]
        %v1302 = vld [vmem:[%s1287 + $0x70] sm:$0xff]
        %v1303 = vld [vmem:[%s1287 + $0x78] sm:$0xff]
        %v1304 = vld [vmem:[%s8 + $0x1] sm:$0x1]
        %v1305 = vperm.slane %v1304, 0
        %1306 = vmatpush.msra.mxu0 %v1303
        %1307 = vmatpush.msra.mxu0 %v1302
        %1308 = vmatpush.msra.mxu0 %v1301
        %1309 = vmatpush.msra.mxu0 %v1300
        %1310 = vmatpush.msra.mxu0 %v1299
        %1311 = vmatpush.msra.mxu0 %v1298
        %1312 = vmatpush.msra.mxu0 %v1297
        %1313 = vmatpush.msra.mxu0 %v1296
        %1314 = vmatpush.msra.mxu0 %v1295
        %1315 = vmatpush.msra.mxu0 %v1294
        %1316 = vmatpush.msra.mxu0 %v1293
        %1317 = vmatpush.msra.mxu0 %v1292
        %1318 = vmatpush.msra.mxu0 %v1291
        %1319 = vmatpush.msra.mxu0 %v1290
        %1320 = vmatpush.msra.mxu0 %v1289
        %1321 = vmatpush.msra.mxu0 %v1288
        %1322 = vmatmul.f32.gmra.mxu0 %v1059
        %v1323 = vpop.f32.mrf.mxu0
        %v1324 = vadd.f32 %v1305, %v1323
        %1325 = vmatmul.f32.gmra.mxu0 %v1060
        %v1326 = vpop.f32.mrf.mxu0
        %v1327 = vadd.f32 %v1305, %v1326
        %1328 = vmatmul.f32.gmra.mxu0 %v1061
        %v1329 = vpop.f32.mrf.mxu0
        %v1330 = vadd.f32 %v1305, %v1329
        %1331 = vmatmul.f32.gmra.mxu0 %v1062
        %v1332 = vpop.f32.mrf.mxu0
        %v1333 = vadd.f32 %v1305, %v1332
        %1334 = vdwg.mxu0
        %v1335 = vsub.f32 0.0, %v1324
        %v1336 = vsub.f32 0.0, %v1327
        %v1337 = vsub.f32 0.0, %v1330
        %v1338 = vsub.f32 0.0, %v1333
        %v1339 = vmul.f32 %v1335, 1.442695
        %v1340 = vpow.pop %v1339
        %v1341 = vmul.f32 %v1336, 1.442695
        %v1342 = vpow.pop %v1341
        %v1343 = vmul.f32 %v1337, 1.442695
        %v1344 = vpow.pop %v1343
        %v1345 = vmul.f32 %v1338, 1.442695
        %v1346 = vpow.pop %v1345
        %v1347 = vadd.f32 %v1340, 1.0
        %v1348 = vadd.f32 %v1342, 1.0
        %v1349 = vadd.f32 %v1344, 1.0
        %v1350 = vadd.f32 %v1346, 1.0
        %v1351 = vrcp.pop %v1347
        %v1352 = vrcp.pop %v1348
        %v1353 = vrcp.pop %v1349
        %v1354 = vrcp.pop %v1350
        %1355 = vmatpush.msra.mxu0 0.0
        %1356 = vmatpush.msra.mxu0 0.0
        %1357 = vmatpush.msra.mxu0 0.0
        %1358 = vmatpush.msra.mxu0 0.0
        %1359 = vmatpush.msra.mxu0 0.0
        %1360 = vmatpush.msra.mxu0 0.0
        %1361 = vmatpush.msra.mxu0 0.0
        %1362 = vmatpush.msra.mxu0 0.0
        %1363 = vmatpush.msra.mxu0 0.0
        %1364 = vmatpush.msra.mxu0 0.0
        %1365 = vmatpush.msra.mxu0 0.0
        %1366 = vmatpush.msra.mxu0 0.0
        %1367 = vmatpush.msra.mxu0 %v1354
        %1368 = vmatpush.msra.mxu0 %v1353
        %1369 = vmatpush.msra.mxu0 %v1352
        %1370 = vmatpush.msra.mxu0 %v1351
        %1371 = vmatmul.f32.gmra.mxu0 %v861
        %v1372 = vpop.f32.mrf.mxu0
        %v1373 = vadd.f32 0.0, %v1372
        %1374 = vmatmul.f32.gmra.mxu0 %v864
        %v1375 = vpop.f32.mrf.mxu0
        %v1376 = vadd.f32 0.0, %v1375
        %1377 = vmatmul.f32.gmra.mxu0 %v867
        %v1378 = vpop.f32.mrf.mxu0
        %v1379 = vadd.f32 0.0, %v1378
        %1380 = vmatmul.f32.gmra.mxu0 %v870
        %v1381 = vpop.f32.mrf.mxu0
        %v1382 = vadd.f32 0.0, %v1381
        %1383 = vdwg.mxu0
        %1384 = vmatpush.msra.mxu0 %v574
        %1385 = vmatpush.msra.mxu0 %v573
        %1386 = vmatpush.msra.mxu0 %v572
        %1387 = vmatpush.msra.mxu0 %v571
        %1388 = vmatpush.msra.mxu0 %v570
        %1389 = vmatpush.msra.mxu0 %v569
        %1390 = vmatpush.msra.mxu0 %v568
        %1391 = vmatpush.msra.mxu0 %v567
        %1392 = vmatpush.msra.mxu0 %v566
        %1393 = vmatpush.msra.mxu0 %v565
        %1394 = vmatpush.msra.mxu0 %v564
        %1395 = vmatpush.msra.mxu0 %v563
        %1396 = vmatpush.msra.mxu0 %v562
        %1397 = vmatpush.msra.mxu0 %v561
        %1398 = vmatpush.msra.mxu0 %v560
        %1399 = vmatpush.msra.mxu0 %v559
        %1400 = vmatmul.f32.gmra.mxu0 %v1373
        %v1401 = vpop.f32.mrf.mxu0
        %v1402 = vadd.f32 0.0, %v1401
        %1403 = vmatmul.f32.gmra.mxu0 %v1376
        %v1404 = vpop.f32.mrf.mxu0
        %v1405 = vadd.f32 0.0, %v1404
        %1406 = vmatmul.f32.gmra.mxu0 %v1379
        %v1407 = vpop.f32.mrf.mxu0
        %v1408 = vadd.f32 0.0, %v1407
        %1409 = vmatmul.f32.gmra.mxu0 %v1382
        %v1410 = vpop.f32.mrf.mxu0
        %v1411 = vadd.f32 0.0, %v1410
        %1412 = vdwg.mxu0
        %v1413 = vmul.f32 %v1402, 0.11111111
        %v1414 = vmul.f32 %v1405, 0.11111111
        %v1415 = vmul.f32 %v1408, 0.11111111
        %v1416 = vmul.f32 %v1411, 0.11111111
        %v1417 = vsub.f32 %v1351, %v1413
        %v1418 = vsub.f32 %v1352, %v1414
        %v1419 = vsub.f32 %v1353, %v1415
        %v1420 = vsub.f32 %v1354, %v1416
        %s1421 = scalar_lea.vmem [#allocation11], 128
        %v1422 = vld [vmem:[%s1421] sm:$0xff]
        %v1423 = vld [vmem:[%s1421 + $0x8] sm:$0xff]
        %v1424 = vld [vmem:[%s1421 + $0x10] sm:$0xff]
        %v1425 = vld [vmem:[%s1421 + $0x18] sm:$0xff]
        %v1426 = vld [vmem:[%s1421 + $0x20] sm:$0xff]
        %v1427 = vld [vmem:[%s1421 + $0x28] sm:$0xff]
        %v1428 = vld [vmem:[%s1421 + $0x30] sm:$0xff]
        %v1429 = vld [vmem:[%s1421 + $0x38] sm:$0xff]
        %v1430 = vld [vmem:[%s1421 + $0x40] sm:$0xff]
        %v1431 = vld [vmem:[%s1421 + $0x48] sm:$0xff]
        %v1432 = vld [vmem:[%s1421 + $0x50] sm:$0xff]
        %v1433 = vld [vmem:[%s1421 + $0x58] sm:$0xff]
        %v1434 = vld [vmem:[%s1421 + $0x60] sm:$0xff]
        %v1435 = vld [vmem:[%s1421 + $0x68] sm:$0xff]
        %v1436 = vld [vmem:[%s1421 + $0x70] sm:$0xff]
        %v1437 = vld [vmem:[%s1421 + $0x78] sm:$0xff]
        %v1438 = vld [vmem:[%s10 + $0x1] sm:$0x1]
        %v1439 = vperm.slane %v1438, 0
        %1440 = vmatpush.msra.mxu0 %v1437
        %1441 = vmatpush.msra.mxu0 %v1436
        %1442 = vmatpush.msra.mxu0 %v1435
        %1443 = vmatpush.msra.mxu0 %v1434
        %1444 = vmatpush.msra.mxu0 %v1433
        %1445 = vmatpush.msra.mxu0 %v1432
        %1446 = vmatpush.msra.mxu0 %v1431
        %1447 = vmatpush.msra.mxu0 %v1430
        %1448 = vmatpush.msra.mxu0 %v1429
        %1449 = vmatpush.msra.mxu0 %v1428
        %1450 = vmatpush.msra.mxu0 %v1427
        %1451 = vmatpush.msra.mxu0 %v1426
        %1452 = vmatpush.msra.mxu0 %v1425
        %1453 = vmatpush.msra.mxu0 %v1424
        %1454 = vmatpush.msra.mxu0 %v1423
        %1455 = vmatpush.msra.mxu0 %v1422
        %1456 = vmatmul.f32.gmra.mxu0 %v1417
        %v1457 = vpop.f32.mrf.mxu0
        %v1458 = vadd.f32 %v1439, %v1457
        %1459 = vmatmul.f32.gmra.mxu0 %v1418
        %v1460 = vpop.f32.mrf.mxu0
        %v1461 = vadd.f32 %v1439, %v1460
        %1462 = vmatmul.f32.gmra.mxu0 %v1419
        %v1463 = vpop.f32.mrf.mxu0
        %v1464 = vadd.f32 %v1439, %v1463
        %1465 = vmatmul.f32.gmra.mxu0 %v1420
        %v1466 = vpop.f32.mrf.mxu0
        %v1467 = vadd.f32 %v1439, %v1466
        %1468 = vdwg.mxu0
        %v1469 = vsub.f32 0.0, %v1458
        %v1470 = vsub.f32 0.0, %v1461
        %v1471 = vsub.f32 0.0, %v1464
        %v1472 = vsub.f32 0.0, %v1467
        %v1473 = vmul.f32 %v1469, 1.442695
        %v1474 = vpow.pop %v1473
        %v1475 = vmul.f32 %v1470, 1.442695
        %v1476 = vpow.pop %v1475
        %v1477 = vmul.f32 %v1471, 1.442695
        %v1478 = vpow.pop %v1477
        %v1479 = vmul.f32 %v1472, 1.442695
        %v1480 = vpow.pop %v1479
        %v1481 = vadd.f32 %v1474, 1.0
        %v1482 = vadd.f32 %v1476, 1.0
        %v1483 = vadd.f32 %v1478, 1.0
        %v1484 = vadd.f32 %v1480, 1.0
        %v1485 = vrcp.pop %v1481
        %v1486 = vrcp.pop %v1482
        %v1487 = vrcp.pop %v1483
        %v1488 = vrcp.pop %v1484
        %v1489 = vadd.f32 %v1351, %v1485
        %v1490 = vadd.f32 %v1352, %v1486
        %v1491 = vadd.f32 %v1353, %v1487
        %v1492 = vadd.f32 %v1354, %v1488
        %s1493 = scalar_lea.vmem [#allocation13], 512
        %v1494 = vld [vmem:[%s1493] sm:$0xff]
        %v1495 = vld [vmem:[%s1493 + $0x8] sm:$0xff]
        %v1496 = vld [vmem:[%s1493 + $0x10] sm:$0xff]
        %v1497 = vld [vmem:[%s1493 + $0x18] sm:$0xff]
        %v1498 = vld [vmem:[%s1493 + $0x20] sm:$0xff]
        %v1499 = vld [vmem:[%s1493 + $0x28] sm:$0xff]
        %v1500 = vld [vmem:[%s1493 + $0x30] sm:$0xff]
        %v1501 = vld [vmem:[%s1493 + $0x38] sm:$0xff]
        %v1502 = vld [vmem:[%s1493 + $0x40] sm:$0xff]
        %v1503 = vld [vmem:[%s1493 + $0x48] sm:$0xff]
        %v1504 = vld [vmem:[%s1493 + $0x50] sm:$0xff]
        %v1505 = vld [vmem:[%s1493 + $0x58] sm:$0xff]
        %v1506 = vld [vmem:[%s1493 + $0x60] sm:$0xff]
        %v1507 = vld [vmem:[%s1493 + $0x68] sm:$0xff]
        %v1508 = vld [vmem:[%s1493 + $0x70] sm:$0xff]
        %v1509 = vld [vmem:[%s1493 + $0x78] sm:$0xff]
        %v1510 = vld [vmem:[%s1493 + $0x80] sm:$0xff]
        %v1511 = vld [vmem:[%s1493 + $0x88] sm:$0xff]
        %v1512 = vld [vmem:[%s1493 + $0x90] sm:$0xff]
        %v1513 = vld [vmem:[%s1493 + $0x98] sm:$0xff]
        %v1514 = vld [vmem:[%s1493 + $0xa0] sm:$0xff]
        %v1515 = vld [vmem:[%s1493 + $0xa8] sm:$0xff]
        %v1516 = vld [vmem:[%s1493 + $0xb0] sm:$0xff]
        %v1517 = vld [vmem:[%s1493 + $0xb8] sm:$0xff]
        %v1518 = vld [vmem:[%s1493 + $0xc0] sm:$0xff]
        %v1519 = vld [vmem:[%s1493 + $0xc8] sm:$0xff]
        %v1520 = vld [vmem:[%s1493 + $0xd0] sm:$0xff]
        %v1521 = vld [vmem:[%s1493 + $0xd8] sm:$0xff]
        %v1522 = vld [vmem:[%s1493 + $0xe0] sm:$0xff]
        %v1523 = vld [vmem:[%s1493 + $0xe8] sm:$0xff]
        %v1524 = vld [vmem:[%s1493 + $0xf0] sm:$0xff]
        %v1525 = vld [vmem:[%s1493 + $0xf8] sm:$0xff]
        %1526 = vmatpush.msra.mxu0 %v1524
        %1527 = vmatpush.msra.mxu0 %v1522
        %1528 = vmatpush.msra.mxu0 %v1520
        %1529 = vmatpush.msra.mxu0 %v1518
        %1530 = vmatpush.msra.mxu0 %v1516
        %1531 = vmatpush.msra.mxu0 %v1514
        %1532 = vmatpush.msra.mxu0 %v1512
        %1533 = vmatpush.msra.mxu0 %v1510
        %1534 = vmatpush.msra.mxu0 %v1508
        %1535 = vmatpush.msra.mxu0 %v1506
        %1536 = vmatpush.msra.mxu0 %v1504
        %1537 = vmatpush.msra.mxu0 %v1502
        %1538 = vmatpush.msra.mxu0 %v1500
        %1539 = vmatpush.msra.mxu0 %v1498
        %1540 = vmatpush.msra.mxu0 %v1496
        %1541 = vmatpush.msra.mxu0 %v1494
        %1542 = vmatmul.f32.gmra.mxu0 %v1489
        %v1543 = vpop.f32.mrf.mxu0
        %v1544 = vadd.f32 0.0, %v1543
        %1545 = vmatmul.f32.gmra.mxu0 %v1490
        %v1546 = vpop.f32.mrf.mxu0
        %v1547 = vadd.f32 0.0, %v1546
        %1548 = vmatmul.f32.gmra.mxu0 %v1491
        %v1549 = vpop.f32.mrf.mxu0
        %v1550 = vadd.f32 0.0, %v1549
        %1551 = vmatmul.f32.gmra.mxu0 %v1492
        %v1552 = vpop.f32.mrf.mxu0
        %v1553 = vadd.f32 0.0, %v1552
        %1554 = vdwg.mxu0
        %1555 = vmatpush.msra.mxu0 %v1525
        %1556 = vmatpush.msra.mxu0 %v1523
        %1557 = vmatpush.msra.mxu0 %v1521
        %1558 = vmatpush.msra.mxu0 %v1519
        %1559 = vmatpush.msra.mxu0 %v1517
        %1560 = vmatpush.msra.mxu0 %v1515
        %1561 = vmatpush.msra.mxu0 %v1513
        %1562 = vmatpush.msra.mxu0 %v1511
        %1563 = vmatpush.msra.mxu0 %v1509
        %1564 = vmatpush.msra.mxu0 %v1507
        %1565 = vmatpush.msra.mxu0 %v1505
        %1566 = vmatpush.msra.mxu0 %v1503
        %1567 = vmatpush.msra.mxu0 %v1501
        %1568 = vmatpush.msra.mxu0 %v1499
        %1569 = vmatpush.msra.mxu0 %v1497
        %1570 = vmatpush.msra.mxu0 %v1495
        %1571 = vmatmul.f32.gmra.mxu0 %v1489
        %v1572 = vpop.f32.mrf.mxu0
        %v1573 = vadd.f32 0.0, %v1572
        %1574 = vmatmul.f32.gmra.mxu0 %v1490
        %v1575 = vpop.f32.mrf.mxu0
        %v1576 = vadd.f32 0.0, %v1575
        %1577 = vmatmul.f32.gmra.mxu0 %v1491
        %v1578 = vpop.f32.mrf.mxu0
        %v1579 = vadd.f32 0.0, %v1578
        %1580 = vmatmul.f32.gmra.mxu0 %v1492
        %v1581 = vpop.f32.mrf.mxu0
        %v1582 = vadd.f32 0.0, %v1581
        %1583 = vdwg.mxu0
        %v1584 = vadd.f32 %v1247, %v1544
        %v1585 = vadd.f32 %v1276, %v1573
        %v1586 = vadd.f32 %v1250, %v1547
        %v1587 = vadd.f32 %v1279, %v1576
        %v1588 = vadd.f32 %v1253, %v1550
        %v1589 = vadd.f32 %v1282, %v1579
        %v1590 = vadd.f32 %v1256, %v1553
        %v1591 = vadd.f32 %v1285, %v1582
        %s1592 = scalar_lea.vmem [#allocation10], 256
        %v1593 = vld [vmem:[%s1592] sm:$0xff]
        %v1594 = vld [vmem:[%s1592 + $0x8] sm:$0xff]
        %v1595 = vld [vmem:[%s1592 + $0x10] sm:$0xff]
        %v1596 = vld [vmem:[%s1592 + $0x18] sm:$0xff]
        %v1597 = vld [vmem:[%s1592 + $0x20] sm:$0xff]
        %v1598 = vld [vmem:[%s1592 + $0x28] sm:$0xff]
        %v1599 = vld [vmem:[%s1592 + $0x30] sm:$0xff]
        %v1600 = vld [vmem:[%s1592 + $0x38] sm:$0xff]
        %v1601 = vld [vmem:[%s1592 + $0x40] sm:$0xff]
        %v1602 = vld [vmem:[%s1592 + $0x48] sm:$0xff]
        %v1603 = vld [vmem:[%s1592 + $0x50] sm:$0xff]
        %v1604 = vld [vmem:[%s1592 + $0x58] sm:$0xff]
        %v1605 = vld [vmem:[%s1592 + $0x60] sm:$0xff]
        %v1606 = vld [vmem:[%s1592 + $0x68] sm:$0xff]
        %v1607 = vld [vmem:[%s1592 + $0x70] sm:$0xff]
        %v1608 = vld [vmem:[%s1592 + $0x78] sm:$0xff]
        %v1609 = vld [vmem:[%s8 + $0x2] sm:$0x1]
        %v1610 = vperm.slane %v1609, 0
        %1611 = vmatpush.msra.mxu0 %v1608
        %1612 = vmatpush.msra.mxu0 %v1607
        %1613 = vmatpush.msra.mxu0 %v1606
        %1614 = vmatpush.msra.mxu0 %v1605
        %1615 = vmatpush.msra.mxu0 %v1604
        %1616 = vmatpush.msra.mxu0 %v1603
        %1617 = vmatpush.msra.mxu0 %v1602
        %1618 = vmatpush.msra.mxu0 %v1601
        %1619 = vmatpush.msra.mxu0 %v1600
        %1620 = vmatpush.msra.mxu0 %v1599
        %1621 = vmatpush.msra.mxu0 %v1598
        %1622 = vmatpush.msra.mxu0 %v1597
        %1623 = vmatpush.msra.mxu0 %v1596
        %1624 = vmatpush.msra.mxu0 %v1595
        %1625 = vmatpush.msra.mxu0 %v1594
        %1626 = vmatpush.msra.mxu0 %v1593
        %1627 = vmatmul.f32.gmra.mxu0 %v1413
        %v1628 = vpop.f32.mrf.mxu0
        %v1629 = vadd.f32 %v1610, %v1628
        %1630 = vmatmul.f32.gmra.mxu0 %v1414
        %v1631 = vpop.f32.mrf.mxu0
        %v1632 = vadd.f32 %v1610, %v1631
        %1633 = vmatmul.f32.gmra.mxu0 %v1415
        %v1634 = vpop.f32.mrf.mxu0
        %v1635 = vadd.f32 %v1610, %v1634
        %1636 = vmatmul.f32.gmra.mxu0 %v1416
        %v1637 = vpop.f32.mrf.mxu0
        %v1638 = vadd.f32 %v1610, %v1637
        %1639 = vdwg.mxu0
        %v1640 = vsub.f32 0.0, %v1629
        %v1641 = vsub.f32 0.0, %v1632
        %v1642 = vsub.f32 0.0, %v1635
        %v1643 = vsub.f32 0.0, %v1638
        %v1644 = vmul.f32 %v1640, 1.442695
        %v1645 = vpow.pop %v1644
        %v1646 = vmul.f32 %v1641, 1.442695
        %v1647 = vpow.pop %v1646
        %v1648 = vmul.f32 %v1642, 1.442695
        %v1649 = vpow.pop %v1648
        %v1650 = vmul.f32 %v1643, 1.442695
        %v1651 = vpow.pop %v1650
        %v1652 = vadd.f32 %v1645, 1.0
        %v1653 = vadd.f32 %v1647, 1.0
        %v1654 = vadd.f32 %v1649, 1.0
        %v1655 = vadd.f32 %v1651, 1.0
        %v1656 = vrcp.pop %v1652
        %v1657 = vrcp.pop %v1653
        %v1658 = vrcp.pop %v1654
        %v1659 = vrcp.pop %v1655
        %1660 = vmatpush.msra.mxu0 0.0
        %1661 = vmatpush.msra.mxu0 0.0
        %1662 = vmatpush.msra.mxu0 0.0
        %1663 = vmatpush.msra.mxu0 0.0
        %1664 = vmatpush.msra.mxu0 0.0
        %1665 = vmatpush.msra.mxu0 0.0
        %1666 = vmatpush.msra.mxu0 0.0
        %1667 = vmatpush.msra.mxu0 0.0
        %1668 = vmatpush.msra.mxu0 0.0
        %1669 = vmatpush.msra.mxu0 0.0
        %1670 = vmatpush.msra.mxu0 0.0
        %1671 = vmatpush.msra.mxu0 0.0
        %1672 = vmatpush.msra.mxu0 %v1659
        %1673 = vmatpush.msra.mxu0 %v1658
        %1674 = vmatpush.msra.mxu0 %v1657
        %1675 = vmatpush.msra.mxu0 %v1656
        %1676 = vmatmul.f32.gmra.mxu0 %v861
        %v1677 = vpop.f32.mrf.mxu0
        %v1678 = vadd.f32 0.0, %v1677
        %1679 = vmatmul.f32.gmra.mxu0 %v864
        %v1680 = vpop.f32.mrf.mxu0
        %v1681 = vadd.f32 0.0, %v1680
        %1682 = vmatmul.f32.gmra.mxu0 %v867
        %v1683 = vpop.f32.mrf.mxu0
        %v1684 = vadd.f32 0.0, %v1683
        %1685 = vmatmul.f32.gmra.mxu0 %v870
        %v1686 = vpop.f32.mrf.mxu0
        %v1687 = vadd.f32 0.0, %v1686
        %1688 = vdwg.mxu0
        %1689 = vmatpush.msra.mxu0 %v574
        %1690 = vmatpush.msra.mxu0 %v573
        %1691 = vmatpush.msra.mxu0 %v572
        %1692 = vmatpush.msra.mxu0 %v571
        %1693 = vmatpush.msra.mxu0 %v570
        %1694 = vmatpush.msra.mxu0 %v569
        %1695 = vmatpush.msra.mxu0 %v568
        %1696 = vmatpush.msra.mxu0 %v567
        %1697 = vmatpush.msra.mxu0 %v566
        %1698 = vmatpush.msra.mxu0 %v565
        %1699 = vmatpush.msra.mxu0 %v564
        %1700 = vmatpush.msra.mxu0 %v563
        %1701 = vmatpush.msra.mxu0 %v562
        %1702 = vmatpush.msra.mxu0 %v561
        %1703 = vmatpush.msra.mxu0 %v560
        %1704 = vmatpush.msra.mxu0 %v559
        %1705 = vmatmul.f32.gmra.mxu0 %v1678
        %v1706 = vpop.f32.mrf.mxu0
        %v1707 = vadd.f32 0.0, %v1706
        %1708 = vmatmul.f32.gmra.mxu0 %v1681
        %v1709 = vpop.f32.mrf.mxu0
        %v1710 = vadd.f32 0.0, %v1709
        %1711 = vmatmul.f32.gmra.mxu0 %v1684
        %v1712 = vpop.f32.mrf.mxu0
        %v1713 = vadd.f32 0.0, %v1712
        %1714 = vmatmul.f32.gmra.mxu0 %v1687
        %v1715 = vpop.f32.mrf.mxu0
        %v1716 = vadd.f32 0.0, %v1715
        %1717 = vdwg.mxu0
        %v1718 = vmul.f32 %v1707, 0.11111111
        %v1719 = vmul.f32 %v1710, 0.11111111
        %v1720 = vmul.f32 %v1713, 0.11111111
        %v1721 = vmul.f32 %v1716, 0.11111111
        %v1722 = vsub.f32 %v1656, %v1718
        %v1723 = vsub.f32 %v1657, %v1719
        %v1724 = vsub.f32 %v1658, %v1720
        %v1725 = vsub.f32 %v1659, %v1721
        %s1726 = scalar_lea.vmem [#allocation11], 256
        %v1727 = vld [vmem:[%s1726] sm:$0xff]
        %v1728 = vld [vmem:[%s1726 + $0x8] sm:$0xff]
        %v1729 = vld [vmem:[%s1726 + $0x10] sm:$0xff]
        %v1730 = vld [vmem:[%s1726 + $0x18] sm:$0xff]
        %v1731 = vld [vmem:[%s1726 + $0x20] sm:$0xff]
        %v1732 = vld [vmem:[%s1726 + $0x28] sm:$0xff]
        %v1733 = vld [vmem:[%s1726 + $0x30] sm:$0xff]
        %v1734 = vld [vmem:[%s1726 + $0x38] sm:$0xff]
        %v1735 = vld [vmem:[%s1726 + $0x40] sm:$0xff]
        %v1736 = vld [vmem:[%s1726 + $0x48] sm:$0xff]
        %v1737 = vld [vmem:[%s1726 + $0x50] sm:$0xff]
        %v1738 = vld [vmem:[%s1726 + $0x58] sm:$0xff]
        %v1739 = vld [vmem:[%s1726 + $0x60] sm:$0xff]
        %v1740 = vld [vmem:[%s1726 + $0x68] sm:$0xff]
        %v1741 = vld [vmem:[%s1726 + $0x70] sm:$0xff]
        %v1742 = vld [vmem:[%s1726 + $0x78] sm:$0xff]
        %v1743 = vld [vmem:[%s10 + $0x2] sm:$0x1]
        %v1744 = vperm.slane %v1743, 0
        %1745 = vmatpush.msra.mxu0 %v1742
        %1746 = vmatpush.msra.mxu0 %v1741
        %1747 = vmatpush.msra.mxu0 %v1740
        %1748 = vmatpush.msra.mxu0 %v1739
        %1749 = vmatpush.msra.mxu0 %v1738
        %1750 = vmatpush.msra.mxu0 %v1737
        %1751 = vmatpush.msra.mxu0 %v1736
        %1752 = vmatpush.msra.mxu0 %v1735
        %1753 = vmatpush.msra.mxu0 %v1734
        %1754 = vmatpush.msra.mxu0 %v1733
        %1755 = vmatpush.msra.mxu0 %v1732
        %1756 = vmatpush.msra.mxu0 %v1731
        %1757 = vmatpush.msra.mxu0 %v1730
        %1758 = vmatpush.msra.mxu0 %v1729
        %1759 = vmatpush.msra.mxu0 %v1728
        %1760 = vmatpush.msra.mxu0 %v1727
        %1761 = vmatmul.f32.gmra.mxu0 %v1722
        %v1762 = vpop.f32.mrf.mxu0
        %v1763 = vadd.f32 %v1744, %v1762
        %1764 = vmatmul.f32.gmra.mxu0 %v1723
        %v1765 = vpop.f32.mrf.mxu0
        %v1766 = vadd.f32 %v1744, %v1765
        %1767 = vmatmul.f32.gmra.mxu0 %v1724
        %v1768 = vpop.f32.mrf.mxu0
        %v1769 = vadd.f32 %v1744, %v1768
        %1770 = vmatmul.f32.gmra.mxu0 %v1725
        %v1771 = vpop.f32.mrf.mxu0
        %v1772 = vadd.f32 %v1744, %v1771
        %1773 = vdwg.mxu0
        %v1774 = vsub.f32 0.0, %v1763
        %v1775 = vsub.f32 0.0, %v1766
        %v1776 = vsub.f32 0.0, %v1769
        %v1777 = vsub.f32 0.0, %v1772
        %v1778 = vmul.f32 %v1774, 1.442695
        %v1779 = vpow.pop %v1778
        %v1780 = vmul.f32 %v1775, 1.442695
        %v1781 = vpow.pop %v1780
        %v1782 = vmul.f32 %v1776, 1.442695
        %v1783 = vpow.pop %v1782
        %v1784 = vmul.f32 %v1777, 1.442695
        %v1785 = vpow.pop %v1784
        %v1786 = vadd.f32 %v1779, 1.0
        %v1787 = vadd.f32 %v1781, 1.0
        %v1788 = vadd.f32 %v1783, 1.0
        %v1789 = vadd.f32 %v1785, 1.0
        %v1790 = vrcp.pop %v1786
        %v1791 = vrcp.pop %v1787
        %v1792 = vrcp.pop %v1788
        %v1793 = vrcp.pop %v1789
        %v1794 = vadd.f32 %v1656, %v1790
        %v1795 = vadd.f32 %v1657, %v1791
        %v1796 = vadd.f32 %v1658, %v1792
        %v1797 = vadd.f32 %v1659, %v1793
        %s1798 = scalar_lea.vmem [#allocation13], 768
        %v1799 = vld [vmem:[%s1798] sm:$0xff]
        %v1800 = vld [vmem:[%s1798 + $0x8] sm:$0xff]
        %v1801 = vld [vmem:[%s1798 + $0x10] sm:$0xff]
        %v1802 = vld [vmem:[%s1798 + $0x18] sm:$0xff]
        %v1803 = vld [vmem:[%s1798 + $0x20] sm:$0xff]
        %v1804 = vld [vmem:[%s1798 + $0x28] sm:$0xff]
        %v1805 = vld [vmem:[%s1798 + $0x30] sm:$0xff]
        %v1806 = vld [vmem:[%s1798 + $0x38] sm:$0xff]
        %v1807 = vld [vmem:[%s1798 + $0x40] sm:$0xff]
        %v1808 = vld [vmem:[%s1798 + $0x48] sm:$0xff]
        %v1809 = vld [vmem:[%s1798 + $0x50] sm:$0xff]
        %v1810 = vld [vmem:[%s1798 + $0x58] sm:$0xff]
        %v1811 = vld [vmem:[%s1798 + $0x60] sm:$0xff]
        %v1812 = vld [vmem:[%s1798 + $0x68] sm:$0xff]
        %v1813 = vld [vmem:[%s1798 + $0x70] sm:$0xff]
        %v1814 = vld [vmem:[%s1798 + $0x78] sm:$0xff]
        %v1815 = vld [vmem:[%s1798 + $0x80] sm:$0xff]
        %v1816 = vld [vmem:[%s1798 + $0x88] sm:$0xff]
        %v1817 = vld [vmem:[%s1798 + $0x90] sm:$0xff]
        %v1818 = vld [vmem:[%s1798 + $0x98] sm:$0xff]
        %v1819 = vld [vmem:[%s1798 + $0xa0] sm:$0xff]
        %v1820 = vld [vmem:[%s1798 + $0xa8] sm:$0xff]
        %v1821 = vld [vmem:[%s1798 + $0xb0] sm:$0xff]
        %v1822 = vld [vmem:[%s1798 + $0xb8] sm:$0xff]
        %v1823 = vld [vmem:[%s1798 + $0xc0] sm:$0xff]
        %v1824 = vld [vmem:[%s1798 + $0xc8] sm:$0xff]
        %v1825 = vld [vmem:[%s1798 + $0xd0] sm:$0xff]
        %v1826 = vld [vmem:[%s1798 + $0xd8] sm:$0xff]
        %v1827 = vld [vmem:[%s1798 + $0xe0] sm:$0xff]
        %v1828 = vld [vmem:[%s1798 + $0xe8] sm:$0xff]
        %v1829 = vld [vmem:[%s1798 + $0xf0] sm:$0xff]
        %v1830 = vld [vmem:[%s1798 + $0xf8] sm:$0xff]
        %1831 = vmatpush.msra.mxu0 %v1829
        %1832 = vmatpush.msra.mxu0 %v1827
        %1833 = vmatpush.msra.mxu0 %v1825
        %1834 = vmatpush.msra.mxu0 %v1823
        %1835 = vmatpush.msra.mxu0 %v1821
        %1836 = vmatpush.msra.mxu0 %v1819
        %1837 = vmatpush.msra.mxu0 %v1817
        %1838 = vmatpush.msra.mxu0 %v1815
        %1839 = vmatpush.msra.mxu0 %v1813
        %1840 = vmatpush.msra.mxu0 %v1811
        %1841 = vmatpush.msra.mxu0 %v1809
        %1842 = vmatpush.msra.mxu0 %v1807
        %1843 = vmatpush.msra.mxu0 %v1805
        %1844 = vmatpush.msra.mxu0 %v1803
        %1845 = vmatpush.msra.mxu0 %v1801
        %1846 = vmatpush.msra.mxu0 %v1799
        %1847 = vmatmul.f32.gmra.mxu0 %v1794
        %v1848 = vpop.f32.mrf.mxu0
        %v1849 = vadd.f32 0.0, %v1848
        %1850 = vmatmul.f32.gmra.mxu0 %v1795
        %v1851 = vpop.f32.mrf.mxu0
        %v1852 = vadd.f32 0.0, %v1851
        %1853 = vmatmul.f32.gmra.mxu0 %v1796
        %v1854 = vpop.f32.mrf.mxu0
        %v1855 = vadd.f32 0.0, %v1854
        %1856 = vmatmul.f32.gmra.mxu0 %v1797
        %v1857 = vpop.f32.mrf.mxu0
        %v1858 = vadd.f32 0.0, %v1857
        %1859 = vdwg.mxu0
        %1860 = vmatpush.msra.mxu0 %v1830
        %1861 = vmatpush.msra.mxu0 %v1828
        %1862 = vmatpush.msra.mxu0 %v1826
        %1863 = vmatpush.msra.mxu0 %v1824
        %1864 = vmatpush.msra.mxu0 %v1822
        %1865 = vmatpush.msra.mxu0 %v1820
        %1866 = vmatpush.msra.mxu0 %v1818
        %1867 = vmatpush.msra.mxu0 %v1816
        %1868 = vmatpush.msra.mxu0 %v1814
        %1869 = vmatpush.msra.mxu0 %v1812
        %1870 = vmatpush.msra.mxu0 %v1810
        %1871 = vmatpush.msra.mxu0 %v1808
        %1872 = vmatpush.msra.mxu0 %v1806
        %1873 = vmatpush.msra.mxu0 %v1804
        %1874 = vmatpush.msra.mxu0 %v1802
        %1875 = vmatpush.msra.mxu0 %v1800
        %1876 = vmatmul.f32.gmra.mxu0 %v1794
        %v1877 = vpop.f32.mrf.mxu0
        %v1878 = vadd.f32 0.0, %v1877
        %1879 = vmatmul.f32.gmra.mxu0 %v1795
        %v1880 = vpop.f32.mrf.mxu0
        %v1881 = vadd.f32 0.0, %v1880
        %1882 = vmatmul.f32.gmra.mxu0 %v1796
        %v1883 = vpop.f32.mrf.mxu0
        %v1884 = vadd.f32 0.0, %v1883
        %1885 = vmatmul.f32.gmra.mxu0 %v1797
        %v1886 = vpop.f32.mrf.mxu0
        %v1887 = vadd.f32 0.0, %v1886
        %1888 = vdwg.mxu0
        %v1889 = vadd.f32 %v1584, %v1849
        %v1890 = vadd.f32 %v1585, %v1878
        %v1891 = vadd.f32 %v1586, %v1852
        %v1892 = vadd.f32 %v1587, %v1881
        %v1893 = vadd.f32 %v1588, %v1855
        %v1894 = vadd.f32 %v1589, %v1884
        %v1895 = vadd.f32 %v1590, %v1858
        %v1896 = vadd.f32 %v1591, %v1887
        %v1897 = vld [vmem:[%s12] sm:$0x3]
        %v1899 = vperm.slane %v1897, 0
        %v1900 = vperm.slane %v1897, 1
        %v1903 = vadd.f32 %v1889, %v1899
        %v1904 = vadd.f32 %v1890, %v1900
        %v1905 = vadd.f32 %v1891, %v1899
        %v1906 = vadd.f32 %v1892, %v1900
        %v1907 = vadd.f32 %v1893, %v1899
        %v1908 = vadd.f32 %v1894, %v1900
        %v1909 = vadd.f32 %v1895, %v1899
        %v1910 = vadd.f32 %v1896, %v1900
        %v1911 = vmax.f32 %v1903, 0.0
        %v1912 = vmax.f32 %v1904, 0.0
        %v1913 = vmax.f32 %v1905, 0.0
        %v1914 = vmax.f32 %v1906, 0.0
        %v1915 = vmax.f32 %v1907, 0.0
        %v1916 = vmax.f32 %v1908, 0.0
        %v1917 = vmax.f32 %v1909, 0.0
        %v1918 = vmax.f32 %v1910, 0.0
        %1919 = vst [vmem:[%s549] sm:$0xff] %v1911
        %1920 = vst [vmem:[%s549 + $0x8] sm:$0xff] %v1912
        %1921 = vst [vmem:[%s549 + $0x10] sm:$0xff] %v1913
        %1922 = vst [vmem:[%s549 + $0x18] sm:$0xff] %v1914
        %1923 = vst [vmem:[%s549 + $0x20] sm:$0xff] %v1915
        %1924 = vst [vmem:[%s549 + $0x28] sm:$0xff] %v1916
        %1925 = vst [vmem:[%s549 + $0x30] sm:$0xff] %v1917
        %1926 = vst [vmem:[%s549 + $0x38] sm:$0xff] %v1918
        %s1927 = sand.u32 %s317, 1
        %s1928 = scalar_lea.sflag [#allocation4], %s1927
        %s1929 = sand.u32 %s317, 1
        %s1930 = smul.addr %s1929, 64
        %s1931 = scalar_lea.vmem [#allocation14], %s1930
        // Predicated region
        $region101: #{tpu_custom_call.1} parent=71 // pred_check
          %p1932 = pneg %p327
        $region102: #{tpu_custom_call.1} parent=71 // pred_check_branch
          %1934 = sbr.rel (%p1932) target = $region104
        $region103: #{tpu_custom_call.1} parent=71 // pred_region
          %1936 = vsyncadd %s1928, 0
          %s1937 = smul.addr %s31, 8
          %s1938 = smul.addr %s1937, 8
          %s1939 = scalar_lea.hbm %s13, %s1938
          %s1940 = sshll.u32 %s1931, 4
          %s1941 = int_to_ptr.vmem [resolvable:$true] %s1940
          %s1942 = sshll.u32 %s1939, 4
          %s1943 = int_to_ptr.hbm [resolvable:$true] %s1942
          %1948 = dma.vmem_to_hbm [thread:$0]  %s1941, 1024, %s1943, %s1928, 256, 256, 16
        $region104: #{tpu_custom_call.1} parent=71 // pred_fallthru
          _
      $region72: #{tpu_custom_call.1} parent=5 // pred_fallthru
        _
      %p1949 = scmp.le.s32.totalorder 2, %s26
      // Predicated region
      $region105: #{tpu_custom_call.1} parent=5 // pred_check
        %p1950 = pneg %p1949
      $region106: #{tpu_custom_call.1} parent=5 // pred_check_branch
        %1952 = sbr.rel (%p1950) target = $region108
      $region107: #{tpu_custom_call.1} parent=5 // pred_region
        %s1953 = ssub.s32 %s26, 2
        // Predicated region
        $region109: #{tpu_custom_call.1} parent=107 // pred_check
          %p1954 = pneg %p333
        $region110: #{tpu_custom_call.1} parent=107 // pred_check_branch
          %1956 = sbr.rel (%p1954) target = $region112
        $region111: #{tpu_custom_call.1} parent=107 // pred_region
          %s1957 = sand.u32 %s318, 1
          %s1958 = scalar_lea.sflag [#allocation4], %s1957
          %s1959 = sand.u32 %s318, 1
          %s1960 = smul.addr %s1959, 64
          %s1961 = scalar_lea.vmem [#allocation14], %s1960
          %1963 = dma.done %s1958, 1024
        $region112: #{tpu_custom_call.1} parent=107 // pred_fallthru
          _
      $region108: #{tpu_custom_call.1} parent=5 // pred_fallthru
        _
    $region6: #{tpu_custom_call.1} parent=1 // loop_footer
      %s30 = sadd.s32 1, %s26
    $region7: #{tpu_custom_call.1} parent=1 // loop_footer_branch
      %25 = sbr.rel target = $region3
    $region8: #{tpu_custom_call.1} parent=1 // loop_exit
      _
    %1964 = vsyncpa [#allocation3], 1
    %s1965 = scalar_lea.sflag [#allocation3], 1
    %1966 = vsyncpa %s1965, 1
    %1967 = vsyncpa [#allocation6], 1
    %1968 = vsyncpa [#allocation9], 1
    %1969 = vsyncpa [#allocation12], 1
    %1970 = vsyncpa [#allocation4], 1
    %s1971 = scalar_lea.sflag [#allocation4], 1
    %1972 = vsyncpa %s1971, 1

</llo_original>
